<compile_context>
chip_gen: v7x
topology: tpu7x:2x2x1
jax: 0.10.0
libtpu: 0.0.40
codegen_flags: <defaults>
</compile_context>

<pallas_src>
import functools

import jax
import jax.numpy as jnp
import numpy as np
from jax.experimental import pallas as pl
from jax.experimental.pallas import tpu as pltpu

BN_EPS = 1e-5
# Safe scoped-VMEM ceiling on every generation (v7x has 64 MiB/TC, v5e/v6e 128 MiB).
_VMEM_LIMIT_BYTES = 32 * 1024 * 1024


# ---------------------------------------------------------------------------
# In-kernel conv: accumulate KH*KW shifted (2*OC, IC) @ (IC, OH*OW) matmuls.
# ---------------------------------------------------------------------------
def _conv_accumulate(xs_ref, w_ref, b_ref, *, kh, kw, stride, ow, ohow):
    """xs_ref: (KW*stride, IC, Hq*OW); w_ref: (KH*KW, 2*OC, IC); b_ref: (2*OC, 1).

    Returns the pre-BN conv output for both branches, (2*OC, OH*OW) in f32."""
    acc = None
    for i in range(kh):
        r = i % stride                     # which row-phase slab holds kernel row i
        lane0 = (i // stride) * ow         # static lane offset of the H-shifted window
        for j in range(kw):
            idx = j * stride + r           # leading index into the W-shifted stack
            x_ij = xs_ref[idx, :, pl.ds(lane0, ohow)]            # (IC, OH*OW)
            part = jnp.dot(w_ref[i * kw + j], x_ij,
                           preferred_element_type=jnp.float32)   # (2*OC, OH*OW)
            acc = part if acc is None else acc + part
    return acc + b_ref[...]                # bias broadcast along lanes (f32)


# ---------------------------------------------------------------------------
# Pass 1 (only when is_bn=True): per-sample BN partial statistics.
# ---------------------------------------------------------------------------
def _conv_stats_kernel(xs_ref, w_ref, b_ref, sum_ref, sq_ref,
                       *, kh, kw, stride, ow, ohow):
    y = _conv_accumulate(xs_ref, w_ref, b_ref,
                         kh=kh, kw=kw, stride=stride, ow=ow, ohow=ohow)
    sum_ref[...] = jnp.sum(y, axis=1, keepdims=True)             # (2*OC, 1)
    sq_ref[...] = jnp.sum(y * y, axis=1, keepdims=True)          # (2*OC, 1)


# ---------------------------------------------------------------------------
# Pass 2: recompute conv, apply BN affine (scale/shift), sigmoid gate, write NCHW.
# ---------------------------------------------------------------------------
def _conv_bn_gate_kernel(xs_ref, w_ref, b_ref, ss_ref, o_ref,
                         *, oc, kh, kw, stride, ow, ohow):
    y = _conv_accumulate(xs_ref, w_ref, b_ref,
                         kh=kh, kw=kw, stride=stride, ow=ow, ohow=ohow)
    z = y * ss_ref[:, 0:1] + ss_ref[:, 1:2]                      # f32 elementwise
    ln = z[:oc, :]
    gate = jax.nn.sigmoid(z[oc:, :])                             # EUP
    o_ref[...] = (ln * gate).astype(o_ref.dtype)                 # (OC, OH*OW)


# ---------------------------------------------------------------------------
# XLA glue: W-shifted / strided input stack (only ~KW/stride x the input volume).
# ---------------------------------------------------------------------------
def _build_shifted_input(x, kh, kw, stride, pad, hq, ow, dtype):
    """(N, IC, H, W) -> (N, KW*stride, IC, Hq*OW).

    xs[n, j*stride + r, c, q*OW + ow] = x_pad[n, c, q*stride + r, ow*stride + j]."""
    n, ic, h, _ = x.shape
    hp = h + 2 * pad
    hp_needed = max(hp, hq * stride)
    xp = jnp.pad(x, ((0, 0), (0, 0), (pad, pad + hp_needed - hp), (pad, pad)))
    slabs = []
    for j in range(kw):
        for r in range(stride):
            sl = xp[:, :, r:r + hq * stride:stride, j:j + ow * stride:stride]
            slabs.append(sl)                                     # (N, IC, Hq, OW)
    xs = jnp.stack(slabs, axis=1)                                # (N, KW*s, IC, Hq, OW)
    return xs.reshape(n, kw * stride, ic, hq * ow).astype(dtype)


# ---------------------------------------------------------------------------
# Wrapper
# ---------------------------------------------------------------------------
@functools.partial(jax.jit, static_argnames=("stride", "padding", "compute_dtype",
                                             "is_bn"))
def speech_conv(x_nchw, params, *, stride, padding, compute_dtype="bfloat16",
                is_bn=True):
    """SpeechConv forward: x (N, IC, H, W) -> (N, OC, OH, OW)."""
    w_ln, b_ln, g_ln, beta_ln, w_g, b_g, g_g, beta_g = params
    oc, ic, kh, kw = w_ln.shape
    n, _, h, w = x_nchw.shape
    oc2 = 2 * oc
    cdt = jnp.dtype(compute_dtype)

    oh = (h + 2 * padding - kh) // stride + 1
    ow = (w + 2 * padding - kw) // stride + 1
    ohow = oh * ow
    hq = (kh - 1) // stride + oh            # row-phase slab height
    kws = kw * stride
    m = n * ohow                            # total BN population size

    # ---- XLA prep: shifted input stack + per-offset packed weights / biases ----
    xs = _build_shifted_input(x_nchw, kh, kw, stride, padding, hq, ow, cdt)

    def pack_w(wt):                         # (OC, IC, KH, KW) -> (KH*KW, OC, IC)
        return jnp.transpose(wt, (2, 3, 0, 1)).reshape(kh * kw, oc, ic)

    w_cat = jnp.concatenate([pack_w(w_ln), pack_w(w_g)], axis=1).astype(cdt)
    b_cat = jnp.concatenate([b_ln, b_g]).reshape(oc2, 1).astype(jnp.float32)

    # ---- explicit per-step VMEM budget check (v7x: 64 MiB/TC; v5e/v6e: 128 MiB) ----
    xs_blk = kws * ic * hq * ow * cdt.itemsize
    out_blk = oc * ohow * 4
    w_bytes = kh * kw * oc2 * ic * cdt.itemsize
    y_bytes = oc2 * ohow * 4
    working_set = 2 * xs_blk + 2 * out_blk + w_bytes + 4 * y_bytes + oc2 * 16
    assert working_set <= int(0.6 * _VMEM_LIMIT_BYTES), (
        f"per-sample working set ({working_set} B) exceeds the VMEM budget; "
        "TODO(synk): tile OH into row blocks for very large spatial planes")

    cparams = pltpu.CompilerParams(dimension_semantics=("parallel",),
                                   vmem_limit_bytes=_VMEM_LIMIT_BYTES)
    conv_kw = dict(kh=kh, kw=kw, stride=stride, ow=ow, ohow=ohow)
    conv_flops = 2 * m * (kh * kw * ic) * oc2
    xs_bytes = n * xs_blk

    xs_spec = pl.BlockSpec((None, kws, ic, hq * ow), lambda b: (b, 0, 0, 0))
    w_spec = pl.BlockSpec((kh * kw, oc2, ic), lambda b: (0, 0, 0))
    b_spec = pl.BlockSpec((oc2, 1), lambda b: (0, 0))

    if is_bn:
        # ---- Pass 1: per-sample BN partial statistics (no conv output written) ----
        sum_p, sq_p = pl.pallas_call(
            functools.partial(_conv_stats_kernel, **conv_kw),
            grid=(n,),
            in_specs=[xs_spec, w_spec, b_spec],
            out_specs=(
                pl.BlockSpec((None, oc2, 1), lambda b: (b, 0, 0)),
                pl.BlockSpec((None, oc2, 1), lambda b: (b, 0, 0)),
            ),
            out_shape=(
                jax.ShapeDtypeStruct((n, oc2, 1), jnp.float32),
                jax.ShapeDtypeStruct((n, oc2, 1), jnp.float32),
            ),
            compiler_params=cparams,
            cost_estimate=pl.CostEstimate(
                flops=conv_flops, transcendentals=0,
                bytes_accessed=xs_bytes + w_bytes + 2 * n * oc2 * 4),
        )(xs, w_cat, b_cat)

        # ---- Tiny per-channel combine (XLA): training-mode BN scale / shift ----
        mean = jnp.sum(sum_p, axis=0)[:, 0] / m
        ex2 = jnp.sum(sq_p, axis=0)[:, 0] / m
        var = jnp.maximum(ex2 - mean * mean, 0.0)          # biased variance
        gamma = jnp.concatenate([g_ln, g_g]).astype(jnp.float32)
        beta = jnp.concatenate([beta_ln, beta_g]).astype(jnp.float32)
        scale = gamma * jax.lax.rsqrt(var + BN_EPS)
        shift = beta - mean * scale
    else:
        scale = jnp.ones((oc2,), jnp.float32)
        shift = jnp.zeros((oc2,), jnp.float32)
    ss = jnp.stack([scale, shift], axis=1)                 # (2*OC, 2) f32

    # ---- Pass 2 (the only pass when is_bn=False): conv + BN affine + sigmoid gate,
    #      output written directly in (N, OC, OH*OW) layout (no trailing transpose) ----
    out3 = pl.pallas_call(
        functools.partial(_conv_bn_gate_kernel, oc=oc, **conv_kw),
        grid=(n,),
        in_specs=[xs_spec, w_spec, b_spec,
                  pl.BlockSpec((oc2, 2), lambda b: (0, 0))],
        out_specs=pl.BlockSpec((None, oc, ohow), lambda b: (b, 0, 0)),
        out_shape=jax.ShapeDtypeStruct((n, oc, ohow), jnp.float32),
        compiler_params=cparams,
        cost_estimate=pl.CostEstimate(
            flops=conv_flops + 6 * oc * m, transcendentals=oc * m,
            bytes_accessed=xs_bytes + w_bytes + oc2 * 2 * 4 + oc * m * 4),
    )(xs, w_cat, b_cat, ss)

    return out3.reshape(n, oc, oh, ow)                     # free reshape (no transpose)


# ---------------------------------------------------------------------------
# Pure-JAX reference (for verification)
# ---------------------------------------------------------------------------
def speech_conv_ref(x, params, *, stride, padding, is_bn=True):
    w_ln, b_ln, g_ln, beta_ln, w_g, b_g, g_g, beta_g = params
    dn = jax.lax.conv_dimension_numbers(x.shape, w_ln.shape, ("NCHW", "OIHW", "NCHW"))

    def conv(w, b):
        y = jax.lax.conv_general_dilated(
            x, w, (stride, stride), ((padding, padding), (padding, padding)),
            dimension_numbers=dn)
        return y + b[None, :, None, None]

    def bn(y, gamma, beta):
        mu = jnp.mean(y, axis=(0, 2, 3), keepdims=True)
        var = jnp.mean((y - mu) ** 2, axis=(0, 2, 3), keepdims=True)
        return (y - mu) * jax.lax.rsqrt(var + BN_EPS) * gamma[None, :, None, None] \
            + beta[None, :, None, None]

    ln_y = conv(w_ln, b_ln)
    gate_y = conv(w_g, b_g)
    if is_bn:
        ln = bn(ln_y, g_ln, beta_ln)
        gate = jax.nn.sigmoid(bn(gate_y, g_g, beta_g))
    else:
        ln = ln_y
        gate = jax.nn.sigmoid(gate_y)
    return ln * gate


# ---------------------------------------------------------------------------
if __name__ == "__main__":
    # SpeechConv(in_channels=4, out_channels=8, kernel_size=3, stride=1,
    #            padding=1, is_bn=True); input x: (N=2, C=4, H=16, W=16)
    in_ch, out_ch, ksize, stride, padding = 4, 8, 3, 1, 1
    key = jax.random.PRNGKey(0)
    keys = jax.random.split(key, 12)

    x = jax.random.normal(keys[0], (2, in_ch, 16, 16), dtype=jnp.float32)

    fan_in = in_ch * ksize * ksize
    bound = 1.0 / np.sqrt(fan_in)
    params = (
        jax.random.uniform(keys[1], (out_ch, in_ch, ksize, ksize), minval=-bound, maxval=bound),  # w_ln
        jax.random.uniform(keys[2], (out_ch,), minval=-bound, maxval=bound),                       # b_ln
        jax.random.uniform(keys[3], (out_ch,), minval=0.5, maxval=1.5),                            # bn gamma (ln)
        0.1 * jax.random.normal(keys[4], (out_ch,)),                                               # bn beta  (ln)
        jax.random.uniform(keys[5], (out_ch, in_ch, ksize, ksize), minval=-bound, maxval=bound),  # w_gate
        jax.random.uniform(keys[6], (out_ch,), minval=-bound, maxval=bound),                       # b_gate
        jax.random.uniform(keys[7], (out_ch,), minval=0.5, maxval=1.5),                            # bn gamma (gate)
        0.1 * jax.random.normal(keys[8], (out_ch,)),                                               # bn beta  (gate)
    )

    ref = jax.block_until_ready(speech_conv_ref(x, params, stride=stride, padding=padding))

    # 1) Default optimized path: bf16 matmul operands, f32 accumulation / elementwise.
    out = jax.block_until_ready(speech_conv(x, params, stride=stride, padding=padding))
    assert out.shape == (2, out_ch, 16, 16), out.shape
    np.testing.assert_allclose(np.asarray(out), np.asarray(ref), rtol=5e-2, atol=5e-2)

    # 2) f32-operand path at tight tolerance.
    out_f32 = jax.block_until_ready(
        speech_conv(x, params, stride=stride, padding=padding, compute_dtype="float32"))
    np.testing.assert_allclose(np.asarray(out_f32), np.asarray(ref), rtol=1e-3, atol=1e-3)

    # 3) Ragged spatial plane (OH*OW = 100, not a multiple of 128).
    x2 = jax.random.normal(keys[9], (2, in_ch, 10, 10), dtype=jnp.float32)
    ref2 = jax.block_until_ready(speech_conv_ref(x2, params, stride=stride, padding=padding))
    out2 = jax.block_until_ready(
        speech_conv(x2, params, stride=stride, padding=padding, compute_dtype="float32"))
    np.testing.assert_allclose(np.asarray(out2), np.asarray(ref2), rtol=1e-3, atol=1e-3)

    # 4) is_bn=False -> single fused pallas_call (no statistics pass).
    ref_nb = jax.block_until_ready(
        speech_conv_ref(x, params, stride=stride, padding=padding, is_bn=False))
    out_nb = jax.block_until_ready(
        speech_conv(x, params, stride=stride, padding=padding,
                    compute_dtype="float32", is_bn=False))
    np.testing.assert_allclose(np.asarray(out_nb), np.asarray(ref_nb), rtol=1e-3, atol=1e-3)

    # 5) stride=2 path (row-phase slabs in the shifted input stack).
    x3 = jax.random.normal(keys[10], (2, in_ch, 12, 12), dtype=jnp.float32)
    ref3 = jax.block_until_ready(speech_conv_ref(x3, params, stride=2, padding=padding))
    out3 = jax.block_until_ready(
        speech_conv(x3, params, stride=2, padding=padding, compute_dtype="float32"))
    np.testing.assert_allclose(np.asarray(out3), np.asarray(ref3), rtol=1e-3, atol=1e-3)

    print("KERNEL_OK")
</pallas_src>

<mosaic_0001>
module attributes {stable_mosaic.version = 11 : i64} {
  func.func @_conv_stats_kernel(%arg0: i32, %arg1: memref<1x3x4x288xbf16, #tpu.memory_space<vmem>>, %arg2: memref<9x16x4xbf16, #tpu.memory_space<vmem>>, %arg3: memref<16x1xf32, #tpu.memory_space<vmem>>, %arg4: memref<1x16x1xf32, #tpu.memory_space<vmem>>, %arg5: memref<1x16x1xf32, #tpu.memory_space<vmem>>) attributes {dimension_semantics = [#tpu.dimension_semantics<parallel>], iteration_bounds = array<i64: 2>, scalar_prefetch = 0 : i64, scratch_operands = 0 : i64, tpu.core_type = #tpu.core_type<tc>, window_params = [{transform_indices = @transform_0, window_bounds = array<i64: 1, 3, 4, 288>}, {pipeline_mode = #tpu.pipeline_mode<synchronous>, transform_indices = @transform_1, window_bounds = array<i64: 9, 16, 4>}, {pipeline_mode = #tpu.pipeline_mode<synchronous>, transform_indices = @transform_2, window_bounds = array<i64: 16, 1>}, {transform_indices = @transform_3, window_bounds = array<i64: 1, 16, 1>}, {transform_indices = @transform_4, window_bounds = array<i64: 1, 16, 1>}]} {
    %c0 = arith.constant 0 : index
    %c0_0 = arith.constant 0 : index
    %c0_1 = arith.constant 0 : index
    %c0_2 = arith.constant 0 : index
    %0 = vector.load %arg1[%c0, %c0_0, %c0_1, %c0_2] : memref<1x3x4x288xbf16, #tpu.memory_space<vmem>>, vector<1x1x4x256xbf16>
    %1 = vector.shape_cast %0 : vector<1x1x4x256xbf16> to vector<4x256xbf16>
    %c0_3 = arith.constant 0 : index
    %c0_4 = arith.constant 0 : index
    %c0_5 = arith.constant 0 : index
    %2 = vector.load %arg2[%c0_3, %c0_4, %c0_5] : memref<9x16x4xbf16, #tpu.memory_space<vmem>>, vector<1x16x4xbf16>
    %3 = vector.shape_cast %2 : vector<1x16x4xbf16> to vector<16x4xbf16>
    %cst = arith.constant dense<0.000000e+00> : vector<16x256xf32>
    %4 = tpu.matmul %3, %1, %cst {dimension_numbers = #tpu.dot_dimension_numbers<[1], [0], [0], [1], [0, 0, 1, 1], [], []>} : vector<16x4xbf16>, vector<4x256xbf16>, vector<16x256xf32> -> vector<16x256xf32>
    %c0_6 = arith.constant 0 : index
    %c1 = arith.constant 1 : index
    %c0_7 = arith.constant 0 : index
    %c0_8 = arith.constant 0 : index
    %5 = vector.load %arg1[%c0_6, %c1, %c0_7, %c0_8] : memref<1x3x4x288xbf16, #tpu.memory_space<vmem>>, vector<1x1x4x256xbf16>
    %6 = vector.shape_cast %5 : vector<1x1x4x256xbf16> to vector<4x256xbf16>
    %c1_9 = arith.constant 1 : index
    %c0_10 = arith.constant 0 : index
    %c0_11 = arith.constant 0 : index
    %7 = vector.load %arg2[%c1_9, %c0_10, %c0_11] : memref<9x16x4xbf16, #tpu.memory_space<vmem>>, vector<1x16x4xbf16>
    %8 = vector.shape_cast %7 : vector<1x16x4xbf16> to vector<16x4xbf16>
    %cst_12 = arith.constant dense<0.000000e+00> : vector<16x256xf32>
    %9 = tpu.matmul %8, %6, %cst_12 {dimension_numbers = #tpu.dot_dimension_numbers<[1], [0], [0], [1], [0, 0, 1, 1], [], []>} : vector<16x4xbf16>, vector<4x256xbf16>, vector<16x256xf32> -> vector<16x256xf32>
    %10 = arith.addf %4, %9 : vector<16x256xf32>
    %c0_13 = arith.constant 0 : index
    %c2 = arith.constant 2 : index
    %c0_14 = arith.constant 0 : index
    %c0_15 = arith.constant 0 : index
    %11 = vector.load %arg1[%c0_13, %c2, %c0_14, %c0_15] : memref<1x3x4x288xbf16, #tpu.memory_space<vmem>>, vector<1x1x4x256xbf16>
    %12 = vector.shape_cast %11 : vector<1x1x4x256xbf16> to vector<4x256xbf16>
    %c2_16 = arith.constant 2 : index
    %c0_17 = arith.constant 0 : index
    %c0_18 = arith.constant 0 : index
    %13 = vector.load %arg2[%c2_16, %c0_17, %c0_18] : memref<9x16x4xbf16, #tpu.memory_space<vmem>>, vector<1x16x4xbf16>
    %14 = vector.shape_cast %13 : vector<1x16x4xbf16> to vector<16x4xbf16>
    %cst_19 = arith.constant dense<0.000000e+00> : vector<16x256xf32>
    %15 = tpu.matmul %14, %12, %cst_19 {dimension_numbers = #tpu.dot_dimension_numbers<[1], [0], [0], [1], [0, 0, 1, 1], [], []>} : vector<16x4xbf16>, vector<4x256xbf16>, vector<16x256xf32> -> vector<16x256xf32>
    %16 = arith.addf %10, %15 : vector<16x256xf32>
    %c0_20 = arith.constant 0 : index
    %c0_21 = arith.constant 0 : index
    %c0_22 = arith.constant 0 : index
    %c16 = arith.constant 16 : index
    %17 = vector.load %arg1[%c0_20, %c0_21, %c0_22, %c16] : memref<1x3x4x288xbf16, #tpu.memory_space<vmem>>, vector<1x1x4x256xbf16>
    %18 = vector.shape_cast %17 : vector<1x1x4x256xbf16> to vector<4x256xbf16>
    %c3 = arith.constant 3 : index
    %c0_23 = arith.constant 0 : index
    %c0_24 = arith.constant 0 : index
    %19 = vector.load %arg2[%c3, %c0_23, %c0_24] : memref<9x16x4xbf16, #tpu.memory_space<vmem>>, vector<1x16x4xbf16>
    %20 = vector.shape_cast %19 : vector<1x16x4xbf16> to vector<16x4xbf16>
    %cst_25 = arith.constant dense<0.000000e+00> : vector<16x256xf32>
    %21 = tpu.matmul %20, %18, %cst_25 {dimension_numbers = #tpu.dot_dimension_numbers<[1], [0], [0], [1], [0, 0, 1, 1], [], []>} : vector<16x4xbf16>, vector<4x256xbf16>, vector<16x256xf32> -> vector<16x256xf32>
    %22 = arith.addf %16, %21 : vector<16x256xf32>
    %c0_26 = arith.constant 0 : index
    %c1_27 = arith.constant 1 : index
    %c0_28 = arith.constant 0 : index
    %c16_29 = arith.constant 16 : index
    %23 = vector.load %arg1[%c0_26, %c1_27, %c0_28, %c16_29] : memref<1x3x4x288xbf16, #tpu.memory_space<vmem>>, vector<1x1x4x256xbf16>
    %24 = vector.shape_cast %23 : vector<1x1x4x256xbf16> to vector<4x256xbf16>
    %c4 = arith.constant 4 : index
    %c0_30 = arith.constant 0 : index
    %c0_31 = arith.constant 0 : index
    %25 = vector.load %arg2[%c4, %c0_30, %c0_31] : memref<9x16x4xbf16, #tpu.memory_space<vmem>>, vector<1x16x4xbf16>
    %26 = vector.shape_cast %25 : vector<1x16x4xbf16> to vector<16x4xbf16>
    %cst_32 = arith.constant dense<0.000000e+00> : vector<16x256xf32>
    %27 = tpu.matmul %26, %24, %cst_32 {dimension_numbers = #tpu.dot_dimension_numbers<[1], [0], [0], [1], [0, 0, 1, 1], [], []>} : vector<16x4xbf16>, vector<4x256xbf16>, vector<16x256xf32> -> vector<16x256xf32>
    %28 = arith.addf %22, %27 : vector<16x256xf32>
    %c0_33 = arith.constant 0 : index
    %c2_34 = arith.constant 2 : index
    %c0_35 = arith.constant 0 : index
    %c16_36 = arith.constant 16 : index
    %29 = vector.load %arg1[%c0_33, %c2_34, %c0_35, %c16_36] : memref<1x3x4x288xbf16, #tpu.memory_space<vmem>>, vector<1x1x4x256xbf16>
    %30 = vector.shape_cast %29 : vector<1x1x4x256xbf16> to vector<4x256xbf16>
    %c5 = arith.constant 5 : index
    %c0_37 = arith.constant 0 : index
    %c0_38 = arith.constant 0 : index
    %31 = vector.load %arg2[%c5, %c0_37, %c0_38] : memref<9x16x4xbf16, #tpu.memory_space<vmem>>, vector<1x16x4xbf16>
    %32 = vector.shape_cast %31 : vector<1x16x4xbf16> to vector<16x4xbf16>
    %cst_39 = arith.constant dense<0.000000e+00> : vector<16x256xf32>
    %33 = tpu.matmul %32, %30, %cst_39 {dimension_numbers = #tpu.dot_dimension_numbers<[1], [0], [0], [1], [0, 0, 1, 1], [], []>} : vector<16x4xbf16>, vector<4x256xbf16>, vector<16x256xf32> -> vector<16x256xf32>
    %34 = arith.addf %28, %33 : vector<16x256xf32>
    %c0_40 = arith.constant 0 : index
    %c0_41 = arith.constant 0 : index
    %c0_42 = arith.constant 0 : index
    %c32 = arith.constant 32 : index
    %35 = vector.load %arg1[%c0_40, %c0_41, %c0_42, %c32] : memref<1x3x4x288xbf16, #tpu.memory_space<vmem>>, vector<1x1x4x256xbf16>
    %36 = vector.shape_cast %35 : vector<1x1x4x256xbf16> to vector<4x256xbf16>
    %c6 = arith.constant 6 : index
    %c0_43 = arith.constant 0 : index
    %c0_44 = arith.constant 0 : index
    %37 = vector.load %arg2[%c6, %c0_43, %c0_44] : memref<9x16x4xbf16, #tpu.memory_space<vmem>>, vector<1x16x4xbf16>
    %38 = vector.shape_cast %37 : vector<1x16x4xbf16> to vector<16x4xbf16>
    %cst_45 = arith.constant dense<0.000000e+00> : vector<16x256xf32>
    %39 = tpu.matmul %38, %36, %cst_45 {dimension_numbers = #tpu.dot_dimension_numbers<[1], [0], [0], [1], [0, 0, 1, 1], [], []>} : vector<16x4xbf16>, vector<4x256xbf16>, vector<16x256xf32> -> vector<16x256xf32>
    %40 = arith.addf %34, %39 : vector<16x256xf32>
    %c0_46 = arith.constant 0 : index
    %c1_47 = arith.constant 1 : index
    %c0_48 = arith.constant 0 : index
    %c32_49 = arith.constant 32 : index
    %41 = vector.load %arg1[%c0_46, %c1_47, %c0_48, %c32_49] : memref<1x3x4x288xbf16, #tpu.memory_space<vmem>>, vector<1x1x4x256xbf16>
    %42 = vector.shape_cast %41 : vector<1x1x4x256xbf16> to vector<4x256xbf16>
    %c7 = arith.constant 7 : index
    %c0_50 = arith.constant 0 : index
    %c0_51 = arith.constant 0 : index
    %43 = vector.load %arg2[%c7, %c0_50, %c0_51] : memref<9x16x4xbf16, #tpu.memory_space<vmem>>, vector<1x16x4xbf16>
    %44 = vector.shape_cast %43 : vector<1x16x4xbf16> to vector<16x4xbf16>
    %cst_52 = arith.constant dense<0.000000e+00> : vector<16x256xf32>
    %45 = tpu.matmul %44, %42, %cst_52 {dimension_numbers = #tpu.dot_dimension_numbers<[1], [0], [0], [1], [0, 0, 1, 1], [], []>} : vector<16x4xbf16>, vector<4x256xbf16>, vector<16x256xf32> -> vector<16x256xf32>
    %46 = arith.addf %40, %45 : vector<16x256xf32>
    %c0_53 = arith.constant 0 : index
    %c2_54 = arith.constant 2 : index
    %c0_55 = arith.constant 0 : index
    %c32_56 = arith.constant 32 : index
    %47 = vector.load %arg1[%c0_53, %c2_54, %c0_55, %c32_56] : memref<1x3x4x288xbf16, #tpu.memory_space<vmem>>, vector<1x1x4x256xbf16>
    %48 = vector.shape_cast %47 : vector<1x1x4x256xbf16> to vector<4x256xbf16>
    %c8 = arith.constant 8 : index
    %c0_57 = arith.constant 0 : index
    %c0_58 = arith.constant 0 : index
    %49 = vector.load %arg2[%c8, %c0_57, %c0_58] : memref<9x16x4xbf16, #tpu.memory_space<vmem>>, vector<1x16x4xbf16>
    %50 = vector.shape_cast %49 : vector<1x16x4xbf16> to vector<16x4xbf16>
    %cst_59 = arith.constant dense<0.000000e+00> : vector<16x256xf32>
    %51 = tpu.matmul %50, %48, %cst_59 {dimension_numbers = #tpu.dot_dimension_numbers<[1], [0], [0], [1], [0, 0, 1, 1], [], []>} : vector<16x4xbf16>, vector<4x256xbf16>, vector<16x256xf32> -> vector<16x256xf32>
    %52 = arith.addf %46, %51 : vector<16x256xf32>
    %c0_60 = arith.constant 0 : index
    %c0_61 = arith.constant 0 : index
    %53 = vector.load %arg3[%c0_60, %c0_61] : memref<16x1xf32, #tpu.memory_space<vmem>>, vector<16x1xf32>
    %54 = vector.broadcast %53 : vector<16x1xf32> to vector<16x256xf32>
    %55 = arith.addf %52, %54 : vector<16x256xf32>
    %cst_62 = arith.constant dense<0.000000e+00> : vector<16xf32>
    %56 = vector.multi_reduction <add>, %55, %cst_62 [1] : vector<16x256xf32> to vector<16xf32>
    %57 = vector.shape_cast %56 : vector<16xf32> to vector<16x1xf32>
    %c0_63 = arith.constant 0 : index
    %c0_64 = arith.constant 0 : index
    %c0_65 = arith.constant 0 : index
    %58 = vector.load %arg4[%c0_63, %c0_64, %c0_65] : memref<1x16x1xf32, #tpu.memory_space<vmem>>, vector<1x16x1xf32>
    %59 = vector.shape_cast %58 : vector<1x16x1xf32> to vector<16x1xf32>
    %60 = vector.shape_cast %57 : vector<16x1xf32> to vector<1x16x1xf32>
    tpu.vector_store %arg4[%c0_63, %c0_64, %c0_65], %60 {strides = array<i32>} : memref<1x16x1xf32, #tpu.memory_space<vmem>>, vector<1x16x1xf32>,
    %61 = arith.mulf %55, %55 : vector<16x256xf32>
    %cst_66 = arith.constant dense<0.000000e+00> : vector<16xf32>
    %62 = vector.multi_reduction <add>, %61, %cst_66 [1] : vector<16x256xf32> to vector<16xf32>
    %63 = vector.shape_cast %62 : vector<16xf32> to vector<16x1xf32>
    %c0_67 = arith.constant 0 : index
    %c0_68 = arith.constant 0 : index
    %c0_69 = arith.constant 0 : index
    %64 = vector.load %arg5[%c0_67, %c0_68, %c0_69] : memref<1x16x1xf32, #tpu.memory_space<vmem>>, vector<1x16x1xf32>
    %65 = vector.shape_cast %64 : vector<1x16x1xf32> to vector<16x1xf32>
    %66 = vector.shape_cast %63 : vector<16x1xf32> to vector<1x16x1xf32>
    tpu.vector_store %arg5[%c0_67, %c0_68, %c0_69], %66 {strides = array<i32>} : memref<1x16x1xf32, #tpu.memory_space<vmem>>, vector<1x16x1xf32>,
    return
  }
  func.func @transform_0(%arg0: i32) -> (i32, i32, i32, i32) {
    %c0_i32 = arith.constant 0 : i32
    %c0_i32_0 = arith.constant 0 : i32
    %c0_i32_1 = arith.constant 0 : i32
    %c0_i32_2 = arith.constant 0 : i32
    return %arg0, %c0_i32, %c0_i32_0, %c0_i32_1 : i32, i32, i32, i32
  }
  func.func @transform_1(%arg0: i32) -> (i32, i32, i32) {
    %c0_i32 = arith.constant 0 : i32
    %c0_i32_0 = arith.constant 0 : i32
    %c0_i32_1 = arith.constant 0 : i32
    %c0_i32_2 = arith.constant 0 : i32
    return %c0_i32, %c0_i32_0, %c0_i32_1 : i32, i32, i32
  }
  func.func @transform_2(%arg0: i32) -> (i32, i32) {
    %c0_i32 = arith.constant 0 : i32
    %c0_i32_0 = arith.constant 0 : i32
    %c0_i32_1 = arith.constant 0 : i32
    return %c0_i32, %c0_i32_0 : i32, i32
  }
  func.func @transform_3(%arg0: i32) -> (i32, i32, i32) {
    %c0_i32 = arith.constant 0 : i32
    %c0_i32_0 = arith.constant 0 : i32
    %c0_i32_1 = arith.constant 0 : i32
    return %arg0, %c0_i32, %c0_i32_0 : i32, i32, i32
  }
  func.func @transform_4(%arg0: i32) -> (i32, i32, i32) {
    %c0_i32 = arith.constant 0 : i32
    %c0_i32_0 = arith.constant 0 : i32
    %c0_i32_1 = arith.constant 0 : i32
    return %arg0, %c0_i32, %c0_i32_0 : i32, i32, i32
  }
}

module attributes {stable_mosaic.version = 11 : i64} {
  func.func @_conv_bn_gate_kernel(%arg0: i32, %arg1: memref<1x3x4x288xbf16, #tpu.memory_space<vmem>>, %arg2: memref<9x16x4xbf16, #tpu.memory_space<vmem>>, %arg3: memref<16x1xf32, #tpu.memory_space<vmem>>, %arg4: memref<16x2xf32, #tpu.memory_space<vmem>>, %arg5: memref<1x8x256xf32, #tpu.memory_space<vmem>>) attributes {dimension_semantics = [#tpu.dimension_semantics<parallel>], iteration_bounds = array<i64: 2>, scalar_prefetch = 0 : i64, scratch_operands = 0 : i64, tpu.core_type = #tpu.core_type<tc>, window_params = [{transform_indices = @transform_0, window_bounds = array<i64: 1, 3, 4, 288>}, {pipeline_mode = #tpu.pipeline_mode<synchronous>, transform_indices = @transform_1, window_bounds = array<i64: 9, 16, 4>}, {pipeline_mode = #tpu.pipeline_mode<synchronous>, transform_indices = @transform_2, window_bounds = array<i64: 16, 1>}, {pipeline_mode = #tpu.pipeline_mode<synchronous>, transform_indices = @transform_3, window_bounds = array<i64: 16, 2>}, {transform_indices = @transform_4, window_bounds = array<i64: 1, 8, 256>}]} {
    %c0 = arith.constant 0 : index
    %c0_0 = arith.constant 0 : index
    %c0_1 = arith.constant 0 : index
    %c0_2 = arith.constant 0 : index
    %0 = vector.load %arg1[%c0, %c0_0, %c0_1, %c0_2] : memref<1x3x4x288xbf16, #tpu.memory_space<vmem>>, vector<1x1x4x256xbf16>
    %1 = vector.shape_cast %0 : vector<1x1x4x256xbf16> to vector<4x256xbf16>
    %c0_3 = arith.constant 0 : index
    %c0_4 = arith.constant 0 : index
    %c0_5 = arith.constant 0 : index
    %2 = vector.load %arg2[%c0_3, %c0_4, %c0_5] : memref<9x16x4xbf16, #tpu.memory_space<vmem>>, vector<1x16x4xbf16>
    %3 = vector.shape_cast %2 : vector<1x16x4xbf16> to vector<16x4xbf16>
    %cst = arith.constant dense<0.000000e+00> : vector<16x256xf32>
    %4 = tpu.matmul %3, %1, %cst {dimension_numbers = #tpu.dot_dimension_numbers<[1], [0], [0], [1], [0, 0, 1, 1], [], []>} : vector<16x4xbf16>, vector<4x256xbf16>, vector<16x256xf32> -> vector<16x256xf32>
    %c0_6 = arith.constant 0 : index
    %c1 = arith.constant 1 : index
    %c0_7 = arith.constant 0 : index
    %c0_8 = arith.constant 0 : index
    %5 = vector.load %arg1[%c0_6, %c1, %c0_7, %c0_8] : memref<1x3x4x288xbf16, #tpu.memory_space<vmem>>, vector<1x1x4x256xbf16>
    %6 = vector.shape_cast %5 : vector<1x1x4x256xbf16> to vector<4x256xbf16>
    %c1_9 = arith.constant 1 : index
    %c0_10 = arith.constant 0 : index
    %c0_11 = arith.constant 0 : index
    %7 = vector.load %arg2[%c1_9, %c0_10, %c0_11] : memref<9x16x4xbf16, #tpu.memory_space<vmem>>, vector<1x16x4xbf16>
    %8 = vector.shape_cast %7 : vector<1x16x4xbf16> to vector<16x4xbf16>
    %cst_12 = arith.constant dense<0.000000e+00> : vector<16x256xf32>
    %9 = tpu.matmul %8, %6, %cst_12 {dimension_numbers = #tpu.dot_dimension_numbers<[1], [0], [0], [1], [0, 0, 1, 1], [], []>} : vector<16x4xbf16>, vector<4x256xbf16>, vector<16x256xf32> -> vector<16x256xf32>
    %10 = arith.addf %4, %9 : vector<16x256xf32>
    %c0_13 = arith.constant 0 : index
    %c2 = arith.constant 2 : index
    %c0_14 = arith.constant 0 : index
    %c0_15 = arith.constant 0 : index
    %11 = vector.load %arg1[%c0_13, %c2, %c0_14, %c0_15] : memref<1x3x4x288xbf16, #tpu.memory_space<vmem>>, vector<1x1x4x256xbf16>
    %12 = vector.shape_cast %11 : vector<1x1x4x256xbf16> to vector<4x256xbf16>
    %c2_16 = arith.constant 2 : index
    %c0_17 = arith.constant 0 : index
    %c0_18 = arith.constant 0 : index
    %13 = vector.load %arg2[%c2_16, %c0_17, %c0_18] : memref<9x16x4xbf16, #tpu.memory_space<vmem>>, vector<1x16x4xbf16>
    %14 = vector.shape_cast %13 : vector<1x16x4xbf16> to vector<16x4xbf16>
    %cst_19 = arith.constant dense<0.000000e+00> : vector<16x256xf32>
    %15 = tpu.matmul %14, %12, %cst_19 {dimension_numbers = #tpu.dot_dimension_numbers<[1], [0], [0], [1], [0, 0, 1, 1], [], []>} : vector<16x4xbf16>, vector<4x256xbf16>, vector<16x256xf32> -> vector<16x256xf32>
    %16 = arith.addf %10, %15 : vector<16x256xf32>
    %c0_20 = arith.constant 0 : index
    %c0_21 = arith.constant 0 : index
    %c0_22 = arith.constant 0 : index
    %c16 = arith.constant 16 : index
    %17 = vector.load %arg1[%c0_20, %c0_21, %c0_22, %c16] : memref<1x3x4x288xbf16, #tpu.memory_space<vmem>>, vector<1x1x4x256xbf16>
    %18 = vector.shape_cast %17 : vector<1x1x4x256xbf16> to vector<4x256xbf16>
    %c3 = arith.constant 3 : index
    %c0_23 = arith.constant 0 : index
    %c0_24 = arith.constant 0 : index
    %19 = vector.load %arg2[%c3, %c0_23, %c0_24] : memref<9x16x4xbf16, #tpu.memory_space<vmem>>, vector<1x16x4xbf16>
    %20 = vector.shape_cast %19 : vector<1x16x4xbf16> to vector<16x4xbf16>
    %cst_25 = arith.constant dense<0.000000e+00> : vector<16x256xf32>
    %21 = tpu.matmul %20, %18, %cst_25 {dimension_numbers = #tpu.dot_dimension_numbers<[1], [0], [0], [1], [0, 0, 1, 1], [], []>} : vector<16x4xbf16>, vector<4x256xbf16>, vector<16x256xf32> -> vector<16x256xf32>
    %22 = arith.addf %16, %21 : vector<16x256xf32>
    %c0_26 = arith.constant 0 : index
    %c1_27 = arith.constant 1 : index
    %c0_28 = arith.constant 0 : index
    %c16_29 = arith.constant 16 : index
    %23 = vector.load %arg1[%c0_26, %c1_27, %c0_28, %c16_29] : memref<1x3x4x288xbf16, #tpu.memory_space<vmem>>, vector<1x1x4x256xbf16>
    %24 = vector.shape_cast %23 : vector<1x1x4x256xbf16> to vector<4x256xbf16>
    %c4 = arith.constant 4 : index
    %c0_30 = arith.constant 0 : index
    %c0_31 = arith.constant 0 : index
    %25 = vector.load %arg2[%c4, %c0_30, %c0_31] : memref<9x16x4xbf16, #tpu.memory_space<vmem>>, vector<1x16x4xbf16>
    %26 = vector.shape_cast %25 : vector<1x16x4xbf16> to vector<16x4xbf16>
    %cst_32 = arith.constant dense<0.000000e+00> : vector<16x256xf32>
    %27 = tpu.matmul %26, %24, %cst_32 {dimension_numbers = #tpu.dot_dimension_numbers<[1], [0], [0], [1], [0, 0, 1, 1], [], []>} : vector<16x4xbf16>, vector<4x256xbf16>, vector<16x256xf32> -> vector<16x256xf32>
    %28 = arith.addf %22, %27 : vector<16x256xf32>
    %c0_33 = arith.constant 0 : index
    %c2_34 = arith.constant 2 : index
    %c0_35 = arith.constant 0 : index
    %c16_36 = arith.constant 16 : index
    %29 = vector.load %arg1[%c0_33, %c2_34, %c0_35, %c16_36] : memref<1x3x4x288xbf16, #tpu.memory_space<vmem>>, vector<1x1x4x256xbf16>
    %30 = vector.shape_cast %29 : vector<1x1x4x256xbf16> to vector<4x256xbf16>
    %c5 = arith.constant 5 : index
    %c0_37 = arith.constant 0 : index
    %c0_38 = arith.constant 0 : index
    %31 = vector.load %arg2[%c5, %c0_37, %c0_38] : memref<9x16x4xbf16, #tpu.memory_space<vmem>>, vector<1x16x4xbf16>
    %32 = vector.shape_cast %31 : vector<1x16x4xbf16> to vector<16x4xbf16>
    %cst_39 = arith.constant dense<0.000000e+00> : vector<16x256xf32>
    %33 = tpu.matmul %32, %30, %cst_39 {dimension_numbers = #tpu.dot_dimension_numbers<[1], [0], [0], [1], [0, 0, 1, 1], [], []>} : vector<16x4xbf16>, vector<4x256xbf16>, vector<16x256xf32> -> vector<16x256xf32>
    %34 = arith.addf %28, %33 : vector<16x256xf32>
    %c0_40 = arith.constant 0 : index
    %c0_41 = arith.constant 0 : index
    %c0_42 = arith.constant 0 : index
    %c32 = arith.constant 32 : index
    %35 = vector.load %arg1[%c0_40, %c0_41, %c0_42, %c32] : memref<1x3x4x288xbf16, #tpu.memory_space<vmem>>, vector<1x1x4x256xbf16>
    %36 = vector.shape_cast %35 : vector<1x1x4x256xbf16> to vector<4x256xbf16>
    %c6 = arith.constant 6 : index
    %c0_43 = arith.constant 0 : index
    %c0_44 = arith.constant 0 : index
    %37 = vector.load %arg2[%c6, %c0_43, %c0_44] : memref<9x16x4xbf16, #tpu.memory_space<vmem>>, vector<1x16x4xbf16>
    %38 = vector.shape_cast %37 : vector<1x16x4xbf16> to vector<16x4xbf16>
    %cst_45 = arith.constant dense<0.000000e+00> : vector<16x256xf32>
    %39 = tpu.matmul %38, %36, %cst_45 {dimension_numbers = #tpu.dot_dimension_numbers<[1], [0], [0], [1], [0, 0, 1, 1], [], []>} : vector<16x4xbf16>, vector<4x256xbf16>, vector<16x256xf32> -> vector<16x256xf32>
    %40 = arith.addf %34, %39 : vector<16x256xf32>
    %c0_46 = arith.constant 0 : index
    %c1_47 = arith.constant 1 : index
    %c0_48 = arith.constant 0 : index
    %c32_49 = arith.constant 32 : index
    %41 = vector.load %arg1[%c0_46, %c1_47, %c0_48, %c32_49] : memref<1x3x4x288xbf16, #tpu.memory_space<vmem>>, vector<1x1x4x256xbf16>
    %42 = vector.shape_cast %41 : vector<1x1x4x256xbf16> to vector<4x256xbf16>
    %c7 = arith.constant 7 : index
    %c0_50 = arith.constant 0 : index
    %c0_51 = arith.constant 0 : index
    %43 = vector.load %arg2[%c7, %c0_50, %c0_51] : memref<9x16x4xbf16, #tpu.memory_space<vmem>>, vector<1x16x4xbf16>
    %44 = vector.shape_cast %43 : vector<1x16x4xbf16> to vector<16x4xbf16>
    %cst_52 = arith.constant dense<0.000000e+00> : vector<16x256xf32>
    %45 = tpu.matmul %44, %42, %cst_52 {dimension_numbers = #tpu.dot_dimension_numbers<[1], [0], [0], [1], [0, 0, 1, 1], [], []>} : vector<16x4xbf16>, vector<4x256xbf16>, vector<16x256xf32> -> vector<16x256xf32>
    %46 = arith.addf %40, %45 : vector<16x256xf32>
    %c0_53 = arith.constant 0 : index
    %c2_54 = arith.constant 2 : index
    %c0_55 = arith.constant 0 : index
    %c32_56 = arith.constant 32 : index
    %47 = vector.load %arg1[%c0_53, %c2_54, %c0_55, %c32_56] : memref<1x3x4x288xbf16, #tpu.memory_space<vmem>>, vector<1x1x4x256xbf16>
    %48 = vector.shape_cast %47 : vector<1x1x4x256xbf16> to vector<4x256xbf16>
    %c8 = arith.constant 8 : index
    %c0_57 = arith.constant 0 : index
    %c0_58 = arith.constant 0 : index
    %49 = vector.load %arg2[%c8, %c0_57, %c0_58] : memref<9x16x4xbf16, #tpu.memory_space<vmem>>, vector<1x16x4xbf16>
    %50 = vector.shape_cast %49 : vector<1x16x4xbf16> to vector<16x4xbf16>
    %cst_59 = arith.constant dense<0.000000e+00> : vector<16x256xf32>
    %51 = tpu.matmul %50, %48, %cst_59 {dimension_numbers = #tpu.dot_dimension_numbers<[1], [0], [0], [1], [0, 0, 1, 1], [], []>} : vector<16x4xbf16>, vector<4x256xbf16>, vector<16x256xf32> -> vector<16x256xf32>
    %52 = arith.addf %46, %51 : vector<16x256xf32>
    %c0_60 = arith.constant 0 : index
    %c0_61 = arith.constant 0 : index
    %53 = vector.load %arg3[%c0_60, %c0_61] : memref<16x1xf32, #tpu.memory_space<vmem>>, vector<16x1xf32>
    %54 = vector.broadcast %53 : vector<16x1xf32> to vector<16x256xf32>
    %55 = arith.addf %52, %54 : vector<16x256xf32>
    %c0_62 = arith.constant 0 : index
    %c0_63 = arith.constant 0 : index
    %56 = vector.load %arg4[%c0_62, %c0_63] : memref<16x2xf32, #tpu.memory_space<vmem>>, vector<16x1xf32>
    %57 = vector.broadcast %56 : vector<16x1xf32> to vector<16x256xf32>
    %58 = arith.mulf %55, %57 : vector<16x256xf32>
    %c0_64 = arith.constant 0 : index
    %c1_65 = arith.constant 1 : index
    %59 = vector.load %arg4[%c0_64, %c1_65] : memref<16x2xf32, #tpu.memory_space<vmem>>, vector<16x1xf32>
    %60 = vector.broadcast %59 : vector<16x1xf32> to vector<16x256xf32>
    %61 = arith.addf %58, %60 : vector<16x256xf32>
    %62 = vector.extract_strided_slice %61 {offsets = [0, 0], sizes = [8, 256], strides = [1, 1]} : vector<16x256xf32> to vector<8x256xf32>
    %63 = vector.extract_strided_slice %61 {offsets = [8, 0], sizes = [8, 256], strides = [1, 1]} : vector<16x256xf32> to vector<8x256xf32>
    %64 = arith.negf %63 : vector<8x256xf32>
    %65 = math.exp %64 : vector<8x256xf32>
    %cst_66 = arith.constant 1.000000e+00 : f32
    %66 = vector.broadcast %cst_66 : f32 to vector<8x256xf32>
    %67 = arith.addf %66, %65 : vector<8x256xf32>
    %68 = arith.divf %66, %67 : vector<8x256xf32>
    %69 = arith.mulf %62, %68 : vector<8x256xf32>
    %c0_67 = arith.constant 0 : index
    %c0_68 = arith.constant 0 : index
    %c0_69 = arith.constant 0 : index
    %70 = vector.load %arg5[%c0_67, %c0_68, %c0_69] : memref<1x8x256xf32, #tpu.memory_space<vmem>>, vector<1x8x256xf32>
    %71 = vector.shape_cast %70 : vector<1x8x256xf32> to vector<8x256xf32>
    %72 = vector.shape_cast %69 : vector<8x256xf32> to vector<1x8x256xf32>
    tpu.vector_store %arg5[%c0_67, %c0_68, %c0_69], %72 {strides = array<i32>} : memref<1x8x256xf32, #tpu.memory_space<vmem>>, vector<1x8x256xf32>,
    return
  }
  func.func @transform_0(%arg0: i32) -> (i32, i32, i32, i32) {
    %c0_i32 = arith.constant 0 : i32
    %c0_i32_0 = arith.constant 0 : i32
    %c0_i32_1 = arith.constant 0 : i32
    %c0_i32_2 = arith.constant 0 : i32
    return %arg0, %c0_i32, %c0_i32_0, %c0_i32_1 : i32, i32, i32, i32
  }
  func.func @transform_1(%arg0: i32) -> (i32, i32, i32) {
    %c0_i32 = arith.constant 0 : i32
    %c0_i32_0 = arith.constant 0 : i32
    %c0_i32_1 = arith.constant 0 : i32
    %c0_i32_2 = arith.constant 0 : i32
    return %c0_i32, %c0_i32_0, %c0_i32_1 : i32, i32, i32
  }
  func.func @transform_2(%arg0: i32) -> (i32, i32) {
    %c0_i32 = arith.constant 0 : i32
    %c0_i32_0 = arith.constant 0 : i32
    %c0_i32_1 = arith.constant 0 : i32
    return %c0_i32, %c0_i32_0 : i32, i32
  }
  func.func @transform_3(%arg0: i32) -> (i32, i32) {
    %c0_i32 = arith.constant 0 : i32
    %c0_i32_0 = arith.constant 0 : i32
    %c0_i32_1 = arith.constant 0 : i32
    return %c0_i32, %c0_i32_0 : i32, i32
  }
  func.func @transform_4(%arg0: i32) -> (i32, i32, i32) {
    %c0_i32 = arith.constant 0 : i32
    %c0_i32_0 = arith.constant 0 : i32
    %c0_i32_1 = arith.constant 0 : i32
    return %arg0, %c0_i32, %c0_i32_0 : i32, i32, i32
  }
}

</mosaic_0001>

<llo_original>
// kernel: speech_conv.2
$region0: #{speech_conv.2}
  #allocation0 [shape = 'u32[]', space=smem, size = 0x4, offset = 0x4, fixed_abs, tag = 'smem constant byte address 0x4 - core index']
  #allocation1 [shape = 'u32[144,128]{1,0:T(1,128)}', space=vmem, size = 0x12000, scoped, tag = 'internal scratch']
  %s0 = inlined_call_operand.vmem [shape: bf16[2,3,4,288], index: 0, kind: input, shape index: {}]
  %s1 = inlined_call_operand.vmem [shape: bf16[9,16,4], index: 1, kind: input, shape index: {}]
  %s2 = inlined_call_operand.vmem [shape: f32[16,1], index: 2, kind: input, shape index: {}]
  %s3 = inlined_call_operand.vmem [shape: f32[2,16,1], index: 3, kind: output, shape index: {0}]
  %s4 = inlined_call_operand.vmem [shape: f32[2,16,1], index: 4, kind: output, shape index: {1}]
  %5 = xla_tuple %s3, %s4
  %s6 = sld [smem:[#allocation0]]
  $region53: #{speech_conv.2} parent=0
    _
  %s8 = ssub.s32 1, %s6
  %s9 = scalar_select 0, %s8, %s6
  loop: start=0, step=1, limit=4
  $region2: #{speech_conv.2} parent=0 // loop_pre_header
    _
  $region3: #{speech_conv.2} parent=0 // loop_header
    %s11 = sphi 0, %s15
    %p12 = scmp.ge.s32.totalorder %s11, 4
    %s21 = sphi 0, %s23
    %s24 = sphi 0, %s21
    %s25 = sphi 0, %s24
    %s41 = sphi 0, %s25
    %s45 = sphi 0, %s45
    %s47 = sphi 0, %s45
    %s48 = sphi 0, %s47
    %s62 = sphi 0, %s48
    %s66 = sphi 0, %s66
    %s68 = sphi 0, %s66
    %s69 = sphi 0, %s68
    %s83 = sphi 0, %s69
    %s89 = sphi 0, %s91
    %s92 = sphi 0, %s89
    %s93 = sphi 0, %s92
    %s109 = sphi 0, %s93
    %s115 = sphi 0, %s117
    %s118 = sphi 0, %s115
    %s119 = sphi 0, %s118
    %s135 = sphi 0, %s119
  $region4: #{speech_conv.2} parent=0 // loop_header_branch
    %14 = sbr.rel (%p12) target = $region8
  $region5: #{speech_conv.2} parent=0 // loop_body
    %s16 = ssub.s32 %s11, 1
    %s17 = ssub.s32 %s11, 2
    %s18 = sadd.s32 %s11, 1
    %s19 = ssub.s32 %s11, %s18
    %p20 = scmp.eq.s32.totalorder %s19, 0
    %s22 = sadd.s32 %s21, 1
    %s23 = scalar_select %p20, %s21, %s22
    %p26 = pneg %p20
    %p27 = scmp.eq.s32.totalorder %s11, 1
    %p28 = por %p26, %p27
    %p29 = scmp.ne.s32.totalorder %s21, %s24
    %p30 = scmp.eq.s32.totalorder %s11, 0
    %p31 = por %p29, %p30
    %p32 = scmp.ne.s32.totalorder %s21, %s24
    %p33 = scmp.eq.s32.totalorder %s16, 1
    %p34 = por %p32, %p33
    %p35 = scmp.ne.s32.totalorder %s24, %s25
    %p36 = scmp.eq.s32.totalorder %s16, 0
    %p37 = por %p35, %p36
    %p38 = scmp.ne.s32.totalorder %s24, %s25
    %p39 = scmp.eq.s32.totalorder %s17, 1
    %p40 = por %p38, %p39
    %p42 = scmp.ne.s32.totalorder %s25, %s41
    %p43 = scmp.eq.s32.totalorder %s17, 0
    %p44 = por %p42, %p43
    %s46 = sadd.s32 %s45, 1
    %p49 = scmp.eq.s32.totalorder %s11, 1
    %p50 = scmp.ne.s32.totalorder %s45, %s47
    %p51 = scmp.eq.s32.totalorder %s11, 0
    %p52 = por %p50, %p51
    %p53 = scmp.ne.s32.totalorder %s45, %s47
    %p54 = scmp.eq.s32.totalorder %s16, 1
    %p55 = por %p53, %p54
    %p56 = scmp.ne.s32.totalorder %s47, %s48
    %p57 = scmp.eq.s32.totalorder %s16, 0
    %p58 = por %p56, %p57
    %p59 = scmp.ne.s32.totalorder %s47, %s48
    %p60 = scmp.eq.s32.totalorder %s17, 1
    %p61 = por %p59, %p60
    %p63 = scmp.ne.s32.totalorder %s48, %s62
    %p64 = scmp.eq.s32.totalorder %s17, 0
    %p65 = por %p63, %p64
    %s67 = sadd.s32 %s66, 1
    %p70 = scmp.eq.s32.totalorder %s11, 1
    %p71 = scmp.ne.s32.totalorder %s66, %s68
    %p72 = scmp.eq.s32.totalorder %s11, 0
    %p73 = por %p71, %p72
    %p74 = scmp.ne.s32.totalorder %s66, %s68
    %p75 = scmp.eq.s32.totalorder %s16, 1
    %p76 = por %p74, %p75
    %p77 = scmp.ne.s32.totalorder %s68, %s69
    %p78 = scmp.eq.s32.totalorder %s16, 0
    %p79 = por %p77, %p78
    %p80 = scmp.ne.s32.totalorder %s68, %s69
    %p81 = scmp.eq.s32.totalorder %s17, 1
    %p82 = por %p80, %p81
    %p84 = scmp.ne.s32.totalorder %s69, %s83
    %p85 = scmp.eq.s32.totalorder %s17, 0
    %p86 = por %p84, %p85
    %s87 = ssub.s32 %s11, %s18
    %p88 = scmp.eq.s32.totalorder %s87, 0
    %s90 = sadd.s32 %s89, 1
    %s91 = scalar_select %p88, %s89, %s90
    %p94 = pneg %p88
    %p95 = scmp.eq.s32.totalorder %s11, 1
    %p96 = por %p94, %p95
    %p97 = scmp.ne.s32.totalorder %s89, %s92
    %p98 = scmp.eq.s32.totalorder %s11, 0
    %p99 = por %p97, %p98
    %p100 = scmp.ne.s32.totalorder %s89, %s92
    %p101 = scmp.eq.s32.totalorder %s16, 1
    %p102 = por %p100, %p101
    %p103 = scmp.ne.s32.totalorder %s92, %s93
    %p104 = scmp.eq.s32.totalorder %s16, 0
    %p105 = por %p103, %p104
    %p106 = scmp.ne.s32.totalorder %s92, %s93
    %p107 = scmp.eq.s32.totalorder %s17, 1
    %p108 = por %p106, %p107
    %p110 = scmp.ne.s32.totalorder %s93, %s109
    %p111 = scmp.eq.s32.totalorder %s17, 0
    %p112 = por %p110, %p111
    %s113 = ssub.s32 %s11, %s18
    %p114 = scmp.eq.s32.totalorder %s113, 0
    %s116 = sadd.s32 %s115, 1
    %s117 = scalar_select %p114, %s115, %s116
    %p120 = pneg %p114
    %p121 = scmp.eq.s32.totalorder %s11, 1
    %p122 = por %p120, %p121
    %p123 = scmp.ne.s32.totalorder %s115, %s118
    %p124 = scmp.eq.s32.totalorder %s11, 0
    %p125 = por %p123, %p124
    %p126 = scmp.ne.s32.totalorder %s115, %s118
    %p127 = scmp.eq.s32.totalorder %s16, 1
    %p128 = por %p126, %p127
    %p129 = scmp.ne.s32.totalorder %s118, %s119
    %p130 = scmp.eq.s32.totalorder %s16, 0
    %p131 = por %p129, %p130
    %p132 = scmp.ne.s32.totalorder %s118, %s119
    %p133 = scmp.eq.s32.totalorder %s17, 1
    %p134 = por %p132, %p133
    %p136 = scmp.ne.s32.totalorder %s119, %s135
    %p137 = scmp.eq.s32.totalorder %s17, 0
    %p138 = por %p136, %p137
    %p139 = scmp.le.s32.totalorder 1, %s11
    %p140 = scmp.lt.s32.totalorder %s11, 3
    %p141 = pnand %p139, %p140
    %p142 = pneg %p141
    // Predicated region
    $region9: #{speech_conv.2} parent=5 // pred_check
      _
    $region10: #{speech_conv.2} parent=5 // pred_check_branch
      %144 = sbr.rel (%p141) target = $region12
    $region11: #{speech_conv.2} parent=5 // pred_region
      %s145 = ssub.s32 %s11, 1
      // Predicated region
      $region13: #{speech_conv.2} parent=11 // pred_check
        %p146 = pneg %p58
      $region14: #{speech_conv.2} parent=11 // pred_check_branch
        %148 = sbr.rel (%p146) target = $region16
      $region15: #{speech_conv.2} parent=11 // pred_region
        _
      $region16: #{speech_conv.2} parent=11 // pred_fallthru
        _
      // Predicated region
      $region17: #{speech_conv.2} parent=11 // pred_check
        %p149 = pneg %p79
      $region18: #{speech_conv.2} parent=11 // pred_check_branch
        %151 = sbr.rel (%p149) target = $region20
      $region19: #{speech_conv.2} parent=11 // pred_region
        _
      $region20: #{speech_conv.2} parent=11 // pred_fallthru
        _
    $region12: #{speech_conv.2} parent=5 // pred_fallthru
      _
    %p152 = scmp.lt.s32.totalorder %s11, 2
    // Predicated region
    $region21: #{speech_conv.2} parent=5 // pred_check
      %p153 = pneg %p152
    $region22: #{speech_conv.2} parent=5 // pred_check_branch
      %155 = sbr.rel (%p153) target = $region24
    $region23: #{speech_conv.2} parent=5 // pred_region
      // Predicated region
      $region25: #{speech_conv.2} parent=23 // pred_check
        %p156 = pneg %p31
      $region26: #{speech_conv.2} parent=23 // pred_check_branch
        %158 = sbr.rel (%p156) target = $region28
      $region27: #{speech_conv.2} parent=23 // pred_region
        %p159 = scmp.lt.s32.totalorder %s11, 1
        %s160 = scalar_select %p159, %s11, 1
        %s161 = smul.addr %s160, 9
        %s162 = smul.addr %s161, 2
        %s163 = scalar_lea.vmem %s0, %s162
      $region28: #{speech_conv.2} parent=23 // pred_fallthru
        _
    $region24: #{speech_conv.2} parent=5 // pred_fallthru
      _
    %p164 = scmp.le.s32.totalorder 1, %s11
    %p165 = scmp.lt.s32.totalorder %s11, 3
    %p166 = pnand %p164, %p165
    %p167 = pneg %p166
    // Predicated region
    $region29: #{speech_conv.2} parent=5 // pred_check
      _
    $region30: #{speech_conv.2} parent=5 // pred_check_branch
      %169 = sbr.rel (%p166) target = $region32
    $region31: #{speech_conv.2} parent=5 // pred_region
      %s170 = ssub.s32 %s11, 1
      %p171 = scmp.lt.s32.totalorder %s16, 1
      %s172 = scalar_select %p171, %s16, 1
      %s173 = smul.addr %s172, 9
      %s174 = smul.addr %s173, 2
      %s175 = scalar_lea.vmem %s0, %s174
      %p176 = pneg %p37
      %p177 = pneg %p34
      %p178 = pneg %p58
      %p179 = pneg %p55
      %p180 = pneg %p79
      %p181 = pneg %p76
      %p182 = pneg %p105
      %p183 = pneg %p102
      %p184 = scmp.lt.s32.totalorder %s16, 1
      %s185 = scalar_select %p184, %s16, 1
      %s186 = smul.addr %s185, 2
      %s187 = smul.addr %s186, 8
      %s188 = scalar_lea.vmem %s3, %s187
      %p189 = pneg %p131
      %p190 = pneg %p128
      %p191 = scmp.lt.s32.totalorder %s16, 1
      %s192 = scalar_select %p191, %s16, 1
      %s193 = smul.addr %s192, 2
      %s194 = smul.addr %s193, 8
      %s195 = scalar_lea.vmem %s4, %s194
      %p196 = scmp.lt.s32.totalorder %s16, 1
      %s197 = scalar_select %p196, %s16, 1
      %s198 = smul.addr %s197, 9
      %s199 = smul.addr %s198, 2
      %s200 = scalar_lea.vmem %s0, %s199
      %p201 = scmp.lt.s32.totalorder %s16, 1
      %s202 = scalar_select %p201, %s16, 1
      %s203 = smul.addr %s202, 2
      %s204 = smul.addr %s203, 8
      %s205 = scalar_lea.vmem %s3, %s204
      %p206 = scmp.lt.s32.totalorder %s16, 1
      %s207 = scalar_select %p206, %s16, 1
      %s208 = smul.addr %s207, 2
      %s209 = smul.addr %s208, 8
      %s210 = scalar_lea.vmem %s4, %s209
      %v212 = vld [vmem:[%s200] sm:$0xf]
      %v213 = vld [vmem:[%s1] sm:$0xf]
      %v214 = vld [vmem:[%s1 + $0x4] sm:$0xf]
      %s215 = scalar_lea.vmem %s200, 6
      %v216 = vld [vmem:[%s215] sm:$0xf]
      %s217 = scalar_lea.vmem %s1, 8
      %v218 = vld [vmem:[%s217] sm:$0xf]
      %v219 = vld [vmem:[%s217 + $0x4] sm:$0xf]
      %v222 = vunpack.c.l.b16 %v218
      %v223 = vunpack.c.l.b16 %v219
      %v224 = vpack.c.b16 %v223, %v222
      %v227 = vunpack.c.l.s4 1983009808
      %v228 = vunpack.c.0.s8 %v227
      %v229 = vlaneseq
      %v230 = vshrl.u32 %v229, 7
      %v231 = vsub.s32 %v228, %v230
      %v232 = vrot.slane %v216, %v231
      %v233 = vcombine.high %v232, %v232
      %vm234 = vcmask 31744
      %v236 = vsel %vm234, %v224, 0
      %vm238 = vcmask 1041408
      %v240 = vsel %vm238, %v232, 0
      %v243 = vsel %vm238, %v233, 0
      %245 = vmatprep.subr.bf16.mxu0 %v243
      %246 = vmatpush1.bf16.msra.mxu0 %v240
      %247 = vmatprep.subr.bf16.mxu0 0
      %248 = vmatpush1.bf16.msra.mxu0 0
      %249 = vmatprep.subr.bf16.mxu0 0
      %250 = vmatpush1.bf16.msra.mxu0 0
      %251 = vmatprep.subr.bf16.mxu0 0
      %252 = vmatpush1.bf16.msra.mxu0 0
      %253 = vmatprep.subr.bf16.mxu0 0
      %254 = vmatpush1.bf16.msra.mxu0 0
      %255 = vmatprep.subr.bf16.mxu0 0
      %256 = vmatpush1.bf16.msra.mxu0 0
      %257 = vmatprep.subr.bf16.mxu0 0
      %258 = vmatpush1.bf16.msra.mxu0 0
      %259 = vmatprep.subr.bf16.mxu0 0
      %260 = vmatpush1.bf16.msra.mxu0 0
      %261 = vmatprep.subr.bf16.mxu0 0
      %262 = vmatpush1.bf16.msra.mxu0 0
      %263 = vmatprep.subr.bf16.mxu0 0
      %264 = vmatpush1.bf16.msra.mxu0 0
      %265 = vmatprep.subr.bf16.mxu0 0
      %266 = vmatpush1.bf16.msra.mxu0 0
      %267 = vmatprep.subr.bf16.mxu0 0
      %268 = vmatpush1.bf16.msra.mxu0 0
      %269 = vmatprep.subr.bf16.mxu0 0
      %270 = vmatpush1.bf16.msra.mxu0 0
      %271 = vmatprep.subr.bf16.mxu0 0
      %272 = vmatpush1.bf16.msra.mxu0 0
      %273 = vmatprep.subr.bf16.mxu0 0
      %274 = vmatpush1.bf16.msra.mxu0 0
      %275 = vmatprep.subr.bf16.mxu0 0
      %276 = vmatpush1.bf16.msra.mxu0 0
      %277 = vmatprep.mubr.bf16.mxu0 0
      %278 = vmatmul.mubr.bf16.gmra.mrb[0].mxu0 %v236
      %v279 = vpop.f32.mrb[0].mxu0
      %v280 = vadd.f32 0.0, %v279
      %v281 = vpop.f32.mrb[0].mxu0
      %v282 = vadd.f32 0.0, %v281
      %v283 = vpop.f32.mrb[0].mxu0
      %v284 = vadd.f32 0.0, %v283
      %v285 = vpop.f32.mrb[0].mxu0
      %v286 = vadd.f32 0.0, %v285
      %287 = vdwg.mxu0
      %v290 = vunpack.c.l.b16 %v213
      %v291 = vunpack.c.l.b16 %v214
      %v292 = vpack.c.b16 %v291, %v290
      %v295 = vunpack.c.l.s4 1983009808
      %v296 = vunpack.c.0.s8 %v295
      %v297 = vlaneseq
      %v298 = vshrl.u32 %v297, 7
      %v299 = vsub.s32 %v296, %v298
      %v300 = vrot.slane %v212, %v299
      %v301 = vcombine.high %v300, %v300
      %v303 = vsel %vm234, %v292, 0
      %v306 = vsel %vm238, %v300, 0
      %v309 = vsel %vm238, %v301, 0
      %311 = vmatprep.subr.bf16.mxu0 %v309
      %312 = vmatpush1.bf16.msra.mxu0 %v306
      %313 = vmatprep.subr.bf16.mxu0 0
      %314 = vmatpush1.bf16.msra.mxu0 0
      %315 = vmatprep.subr.bf16.mxu0 0
      %316 = vmatpush1.bf16.msra.mxu0 0
      %317 = vmatprep.subr.bf16.mxu0 0
      %318 = vmatpush1.bf16.msra.mxu0 0
      %319 = vmatprep.subr.bf16.mxu0 0
      %320 = vmatpush1.bf16.msra.mxu0 0
      %321 = vmatprep.subr.bf16.mxu0 0
      %322 = vmatpush1.bf16.msra.mxu0 0
      %323 = vmatprep.subr.bf16.mxu0 0
      %324 = vmatpush1.bf16.msra.mxu0 0
      %325 = vmatprep.subr.bf16.mxu0 0
      %326 = vmatpush1.bf16.msra.mxu0 0
      %327 = vmatprep.subr.bf16.mxu0 0
      %328 = vmatpush1.bf16.msra.mxu0 0
      %329 = vmatprep.subr.bf16.mxu0 0
      %330 = vmatpush1.bf16.msra.mxu0 0
      %331 = vmatprep.subr.bf16.mxu0 0
      %332 = vmatpush1.bf16.msra.mxu0 0
      %333 = vmatprep.subr.bf16.mxu0 0
      %334 = vmatpush1.bf16.msra.mxu0 0
      %335 = vmatprep.subr.bf16.mxu0 0
      %336 = vmatpush1.bf16.msra.mxu0 0
      %337 = vmatprep.subr.bf16.mxu0 0
      %338 = vmatpush1.bf16.msra.mxu0 0
      %339 = vmatprep.subr.bf16.mxu0 0
      %340 = vmatpush1.bf16.msra.mxu0 0
      %341 = vmatprep.subr.bf16.mxu0 0
      %342 = vmatpush1.bf16.msra.mxu0 0
      %343 = vmatprep.mubr.bf16.mxu0 0
      %344 = vmatmul.mubr.bf16.gmra.mrb[0].mxu0 %v303
      %v345 = vpop.f32.mrb[0].mxu0
      %v346 = vadd.f32 %v280, %v345
      %v347 = vpop.f32.mrb[0].mxu0
      %v348 = vadd.f32 %v282, %v347
      %v349 = vpop.f32.mrb[0].mxu0
      %v350 = vadd.f32 %v284, %v349
      %v351 = vpop.f32.mrb[0].mxu0
      %v352 = vadd.f32 %v286, %v351
      %353 = vdwg.mxu0
      %s354 = scalar_lea.vmem %s200, 12
      %v355 = vld [vmem:[%s354] sm:$0xf]
      %s356 = scalar_lea.vmem %s1, 16
      %v357 = vld [vmem:[%s356] sm:$0xf]
      %v358 = vld [vmem:[%s356 + $0x4] sm:$0xf]
      %v361 = vunpack.c.l.b16 %v357
      %v362 = vunpack.c.l.b16 %v358
      %v363 = vpack.c.b16 %v362, %v361
      %v366 = vunpack.c.l.s4 1983009808
      %v367 = vunpack.c.0.s8 %v366
      %v368 = vlaneseq
      %v369 = vshrl.u32 %v368, 7
      %v370 = vsub.s32 %v367, %v369
      %v371 = vrot.slane %v355, %v370
      %v372 = vcombine.high %v371, %v371
      %v374 = vsel %vm234, %v363, 0
      %v377 = vsel %vm238, %v371, 0
      %v380 = vsel %vm238, %v372, 0
      %382 = vmatprep.subr.bf16.mxu0 %v380
      %383 = vmatpush1.bf16.msra.mxu0 %v377
      %384 = vmatprep.subr.bf16.mxu0 0
      %385 = vmatpush1.bf16.msra.mxu0 0
      %386 = vmatprep.subr.bf16.mxu0 0
      %387 = vmatpush1.bf16.msra.mxu0 0
      %388 = vmatprep.subr.bf16.mxu0 0
      %389 = vmatpush1.bf16.msra.mxu0 0
      %390 = vmatprep.subr.bf16.mxu0 0
      %391 = vmatpush1.bf16.msra.mxu0 0
      %392 = vmatprep.subr.bf16.mxu0 0
      %393 = vmatpush1.bf16.msra.mxu0 0
      %394 = vmatprep.subr.bf16.mxu0 0
      %395 = vmatpush1.bf16.msra.mxu0 0
      %396 = vmatprep.subr.bf16.mxu0 0
      %397 = vmatpush1.bf16.msra.mxu0 0
      %398 = vmatprep.subr.bf16.mxu0 0
      %399 = vmatpush1.bf16.msra.mxu0 0
      %400 = vmatprep.subr.bf16.mxu0 0
      %401 = vmatpush1.bf16.msra.mxu0 0
      %402 = vmatprep.subr.bf16.mxu0 0
      %403 = vmatpush1.bf16.msra.mxu0 0
      %404 = vmatprep.subr.bf16.mxu0 0
      %405 = vmatpush1.bf16.msra.mxu0 0
      %406 = vmatprep.subr.bf16.mxu0 0
      %407 = vmatpush1.bf16.msra.mxu0 0
      %408 = vmatprep.subr.bf16.mxu0 0
      %409 = vmatpush1.bf16.msra.mxu0 0
      %410 = vmatprep.subr.bf16.mxu0 0
      %411 = vmatpush1.bf16.msra.mxu0 0
      %412 = vmatprep.subr.bf16.mxu0 0
      %413 = vmatpush1.bf16.msra.mxu0 0
      %414 = vmatprep.mubr.bf16.mxu0 0
      %415 = vmatmul.mubr.bf16.gmra.mrb[0].mxu0 %v374
      %v416 = vpop.f32.mrb[0].mxu0
      %v417 = vadd.f32 0.0, %v416
      %v418 = vpop.f32.mrb[0].mxu0
      %v419 = vadd.f32 0.0, %v418
      %v420 = vpop.f32.mrb[0].mxu0
      %v421 = vadd.f32 0.0, %v420
      %v422 = vpop.f32.mrb[0].mxu0
      %v423 = vadd.f32 0.0, %v422
      %424 = vdwg.mxu0
      %v425 = vadd.f32 %v346, %v417
      %v426 = vadd.f32 %v348, %v419
      %v427 = vadd.f32 %v350, %v421
      %v428 = vadd.f32 %v352, %v423
      %v429 = vld [vmem:[%s200] sm:$0x3f]
      %s430 = scalar_lea.vmem %s1, 24
      %v431 = vld [vmem:[%s430] sm:$0xf]
      %v432 = vld [vmem:[%s430 + $0x4] sm:$0xf]
      %v435 = vunpack.c.l.b16 %v431
      %v436 = vunpack.c.l.b16 %v432
      %v437 = vpack.c.b16 %v436, %v435
      %v439 = vcombine.high %v429, %v429
      %v441 = vunpack.c.l.s4 1983009808
      %v442 = vunpack.c.0.s8 %v441
      %v443 = vlaneseq
      %v444 = vshrl.u32 %v443, 7
      %v445 = vsub.s32 %v442, %v444
      %v446 = vrot.slane %v429, %v445
      %v448 = vunpack.c.l.s4 1983009808
      %v449 = vunpack.c.0.s8 %v448
      %v450 = vlaneseq
      %v451 = vshrl.u32 %v450, 7
      %v452 = vsub.s32 %v449, %v451
      %v453 = vrot.slane %v439, %v452
      %v454 = vcombine.high %v446, %v446
      %455 = vrot.lane.b32.xlu0 %v446, 112
      %v456 = vpop.permute.xlu0 %455
      %457 = vrot.lane.b32.xlu0 %v454, 112
      %v458 = vpop.permute.xlu0 %457
      %459 = vrot.lane.b32.xlu0 %v453, 112
      %v460 = vpop.permute.xlu0 %459
      %vm461 = vcmask 916480
      %v462 = vsel %vm461, %v456, %v458
      %v463 = vsel %vm461, %v458, %v460
      %v465 = vsel %vm234, %v437, 0
      %v468 = vsel %vm238, %v462, 0
      %v471 = vsel %vm238, %v463, 0
      %473 = vmatprep.subr.bf16.mxu0 %v471
      %474 = vmatpush1.bf16.msra.mxu0 %v468
      %475 = vmatprep.subr.bf16.mxu0 0
      %476 = vmatpush1.bf16.msra.mxu0 0
      %477 = vmatprep.subr.bf16.mxu0 0
      %478 = vmatpush1.bf16.msra.mxu0 0
      %479 = vmatprep.subr.bf16.mxu0 0
      %480 = vmatpush1.bf16.msra.mxu0 0
      %481 = vmatprep.subr.bf16.mxu0 0
      %482 = vmatpush1.bf16.msra.mxu0 0
      %483 = vmatprep.subr.bf16.mxu0 0
      %484 = vmatpush1.bf16.msra.mxu0 0
      %485 = vmatprep.subr.bf16.mxu0 0
      %486 = vmatpush1.bf16.msra.mxu0 0
      %487 = vmatprep.subr.bf16.mxu0 0
      %488 = vmatpush1.bf16.msra.mxu0 0
      %489 = vmatprep.subr.bf16.mxu0 0
      %490 = vmatpush1.bf16.msra.mxu0 0
      %491 = vmatprep.subr.bf16.mxu0 0
      %492 = vmatpush1.bf16.msra.mxu0 0
      %493 = vmatprep.subr.bf16.mxu0 0
      %494 = vmatpush1.bf16.msra.mxu0 0
      %495 = vmatprep.subr.bf16.mxu0 0
      %496 = vmatpush1.bf16.msra.mxu0 0
      %497 = vmatprep.subr.bf16.mxu0 0
      %498 = vmatpush1.bf16.msra.mxu0 0
      %499 = vmatprep.subr.bf16.mxu0 0
      %500 = vmatpush1.bf16.msra.mxu0 0
      %501 = vmatprep.subr.bf16.mxu0 0
      %502 = vmatpush1.bf16.msra.mxu0 0
      %503 = vmatprep.subr.bf16.mxu0 0
      %504 = vmatpush1.bf16.msra.mxu0 0
      %505 = vmatprep.mubr.bf16.mxu0 0
      %506 = vmatmul.mubr.bf16.gmra.mrb[0].mxu0 %v465
      %v507 = vpop.f32.mrb[0].mxu0
      %v508 = vadd.f32 0.0, %v507
      %v509 = vpop.f32.mrb[0].mxu0
      %v510 = vadd.f32 0.0, %v509
      %v511 = vpop.f32.mrb[0].mxu0
      %v512 = vadd.f32 0.0, %v511
      %v513 = vpop.f32.mrb[0].mxu0
      %v514 = vadd.f32 0.0, %v513
      %515 = vdwg.mxu0
      %v516 = vadd.f32 %v425, %v508
      %v517 = vadd.f32 %v426, %v510
      %v518 = vadd.f32 %v427, %v512
      %v519 = vadd.f32 %v428, %v514
      %v520 = vld [vmem:[%s215] sm:$0x3f]
      %s521 = scalar_lea.vmem %s1, 32
      %v522 = vld [vmem:[%s521] sm:$0xf]
      %v523 = vld [vmem:[%s521 + $0x4] sm:$0xf]
      %v526 = vunpack.c.l.b16 %v522
      %v527 = vunpack.c.l.b16 %v523
      %v528 = vpack.c.b16 %v527, %v526
      %v530 = vcombine.high %v520, %v520
      %v532 = vunpack.c.l.s4 1983009808
      %v533 = vunpack.c.0.s8 %v532
      %v534 = vlaneseq
      %v535 = vshrl.u32 %v534, 7
      %v536 = vsub.s32 %v533, %v535
      %v537 = vrot.slane %v520, %v536
      %v539 = vunpack.c.l.s4 1983009808
      %v540 = vunpack.c.0.s8 %v539
      %v541 = vlaneseq
      %v542 = vshrl.u32 %v541, 7
      %v543 = vsub.s32 %v540, %v542
      %v544 = vrot.slane %v530, %v543
      %v545 = vcombine.high %v537, %v537
      %546 = vrot.lane.b32.xlu0 %v537, 112
      %v547 = vpop.permute.xlu0 %546
      %548 = vrot.lane.b32.xlu0 %v545, 112
      %v549 = vpop.permute.xlu0 %548
      %550 = vrot.lane.b32.xlu0 %v544, 112
      %v551 = vpop.permute.xlu0 %550
      %v552 = vsel %vm461, %v547, %v549
      %v553 = vsel %vm461, %v549, %v551
      %v555 = vsel %vm234, %v528, 0
      %v558 = vsel %vm238, %v552, 0
      %v561 = vsel %vm238, %v553, 0
      %563 = vmatprep.subr.bf16.mxu0 %v561
      %564 = vmatpush1.bf16.msra.mxu0 %v558
      %565 = vmatprep.subr.bf16.mxu0 0
      %566 = vmatpush1.bf16.msra.mxu0 0
      %567 = vmatprep.subr.bf16.mxu0 0
      %568 = vmatpush1.bf16.msra.mxu0 0
      %569 = vmatprep.subr.bf16.mxu0 0
      %570 = vmatpush1.bf16.msra.mxu0 0
      %571 = vmatprep.subr.bf16.mxu0 0
      %572 = vmatpush1.bf16.msra.mxu0 0
      %573 = vmatprep.subr.bf16.mxu0 0
      %574 = vmatpush1.bf16.msra.mxu0 0
      %575 = vmatprep.subr.bf16.mxu0 0
      %576 = vmatpush1.bf16.msra.mxu0 0
      %577 = vmatprep.subr.bf16.mxu0 0
      %578 = vmatpush1.bf16.msra.mxu0 0
      %579 = vmatprep.subr.bf16.mxu0 0
      %580 = vmatpush1.bf16.msra.mxu0 0
      %581 = vmatprep.subr.bf16.mxu0 0
      %582 = vmatpush1.bf16.msra.mxu0 0
      %583 = vmatprep.subr.bf16.mxu0 0
      %584 = vmatpush1.bf16.msra.mxu0 0
      %585 = vmatprep.subr.bf16.mxu0 0
      %586 = vmatpush1.bf16.msra.mxu0 0
      %587 = vmatprep.subr.bf16.mxu0 0
      %588 = vmatpush1.bf16.msra.mxu0 0
      %589 = vmatprep.subr.bf16.mxu0 0
      %590 = vmatpush1.bf16.msra.mxu0 0
      %591 = vmatprep.subr.bf16.mxu0 0
      %592 = vmatpush1.bf16.msra.mxu0 0
      %593 = vmatprep.subr.bf16.mxu0 0
      %594 = vmatpush1.bf16.msra.mxu0 0
      %595 = vmatprep.mubr.bf16.mxu0 0
      %596 = vmatmul.mubr.bf16.gmra.mrb[0].mxu0 %v555
      %v597 = vpop.f32.mrb[0].mxu0
      %v598 = vadd.f32 0.0, %v597
      %v599 = vpop.f32.mrb[0].mxu0
      %v600 = vadd.f32 0.0, %v599
      %v601 = vpop.f32.mrb[0].mxu0
      %v602 = vadd.f32 0.0, %v601
      %v603 = vpop.f32.mrb[0].mxu0
      %v604 = vadd.f32 0.0, %v603
      %605 = vdwg.mxu0
      %v606 = vadd.f32 %v516, %v598
      %v607 = vadd.f32 %v517, %v600
      %v608 = vadd.f32 %v518, %v602
      %v609 = vadd.f32 %v519, %v604
      %v610 = vld [vmem:[%s354] sm:$0x3f]
      %s611 = scalar_lea.vmem %s1, 40
      %v612 = vld [vmem:[%s611] sm:$0xf]
      %v613 = vld [vmem:[%s611 + $0x4] sm:$0xf]
      %v616 = vunpack.c.l.b16 %v612
      %v617 = vunpack.c.l.b16 %v613
      %v618 = vpack.c.b16 %v617, %v616
      %v620 = vcombine.high %v610, %v610
      %v622 = vunpack.c.l.s4 1983009808
      %v623 = vunpack.c.0.s8 %v622
      %v624 = vlaneseq
      %v625 = vshrl.u32 %v624, 7
      %v626 = vsub.s32 %v623, %v625
      %v627 = vrot.slane %v610, %v626
      %v629 = vunpack.c.l.s4 1983009808
      %v630 = vunpack.c.0.s8 %v629
      %v631 = vlaneseq
      %v632 = vshrl.u32 %v631, 7
      %v633 = vsub.s32 %v630, %v632
      %v634 = vrot.slane %v620, %v633
      %v635 = vcombine.high %v627, %v627
      %636 = vrot.lane.b32.xlu0 %v627, 112
      %v637 = vpop.permute.xlu0 %636
      %638 = vrot.lane.b32.xlu0 %v635, 112
      %v639 = vpop.permute.xlu0 %638
      %640 = vrot.lane.b32.xlu0 %v634, 112
      %v641 = vpop.permute.xlu0 %640
      %v642 = vsel %vm461, %v637, %v639
      %v643 = vsel %vm461, %v639, %v641
      %v645 = vsel %vm234, %v618, 0
      %v648 = vsel %vm238, %v642, 0
      %v651 = vsel %vm238, %v643, 0
      %653 = vmatprep.subr.bf16.mxu0 %v651
      %654 = vmatpush1.bf16.msra.mxu0 %v648
      %655 = vmatprep.subr.bf16.mxu0 0
      %656 = vmatpush1.bf16.msra.mxu0 0
      %657 = vmatprep.subr.bf16.mxu0 0
      %658 = vmatpush1.bf16.msra.mxu0 0
      %659 = vmatprep.subr.bf16.mxu0 0
      %660 = vmatpush1.bf16.msra.mxu0 0
      %661 = vmatprep.subr.bf16.mxu0 0
      %662 = vmatpush1.bf16.msra.mxu0 0
      %663 = vmatprep.subr.bf16.mxu0 0
      %664 = vmatpush1.bf16.msra.mxu0 0
      %665 = vmatprep.subr.bf16.mxu0 0
      %666 = vmatpush1.bf16.msra.mxu0 0
      %667 = vmatprep.subr.bf16.mxu0 0
      %668 = vmatpush1.bf16.msra.mxu0 0
      %669 = vmatprep.subr.bf16.mxu0 0
      %670 = vmatpush1.bf16.msra.mxu0 0
      %671 = vmatprep.subr.bf16.mxu0 0
      %672 = vmatpush1.bf16.msra.mxu0 0
      %673 = vmatprep.subr.bf16.mxu0 0
      %674 = vmatpush1.bf16.msra.mxu0 0
      %675 = vmatprep.subr.bf16.mxu0 0
      %676 = vmatpush1.bf16.msra.mxu0 0
      %677 = vmatprep.subr.bf16.mxu0 0
      %678 = vmatpush1.bf16.msra.mxu0 0
      %679 = vmatprep.subr.bf16.mxu0 0
      %680 = vmatpush1.bf16.msra.mxu0 0
      %681 = vmatprep.subr.bf16.mxu0 0
      %682 = vmatpush1.bf16.msra.mxu0 0
      %683 = vmatprep.subr.bf16.mxu0 0
      %684 = vmatpush1.bf16.msra.mxu0 0
      %685 = vmatprep.mubr.bf16.mxu0 0
      %686 = vmatmul.mubr.bf16.gmra.mrb[0].mxu0 %v645
      %v687 = vpop.f32.mrb[0].mxu0
      %v688 = vadd.f32 0.0, %v687
      %v689 = vpop.f32.mrb[0].mxu0
      %v690 = vadd.f32 0.0, %v689
      %v691 = vpop.f32.mrb[0].mxu0
      %v692 = vadd.f32 0.0, %v691
      %v693 = vpop.f32.mrb[0].mxu0
      %v694 = vadd.f32 0.0, %v693
      %695 = vdwg.mxu0
      %v696 = vadd.f32 %v606, %v688
      %v697 = vadd.f32 %v607, %v690
      %v698 = vadd.f32 %v608, %v692
      %v699 = vadd.f32 %v609, %v694
      %v700 = vld [vmem:[%s200] sm:$0x3f]
      %s701 = scalar_lea.vmem %s1, 48
      %v702 = vld [vmem:[%s701] sm:$0xf]
      %v703 = vld [vmem:[%s701 + $0x4] sm:$0xf]
      %v706 = vunpack.c.l.b16 %v702
      %v707 = vunpack.c.l.b16 %v703
      %v708 = vpack.c.b16 %v707, %v706
      %v710 = vcombine.high %v700, %v700
      %v712 = vunpack.c.l.s4 1983009808
      %v713 = vunpack.c.0.s8 %v712
      %v714 = vlaneseq
      %v715 = vshrl.u32 %v714, 7
      %v716 = vsub.s32 %v713, %v715
      %v717 = vrot.slane %v700, %v716
      %v719 = vunpack.c.l.s4 1983009808
      %v720 = vunpack.c.0.s8 %v719
      %v721 = vlaneseq
      %v722 = vshrl.u32 %v721, 7
      %v723 = vsub.s32 %v720, %v722
      %v724 = vrot.slane %v710, %v723
      %v725 = vcombine.high %v717, %v717
      %726 = vrot.lane.b32.xlu0 %v717, 96
      %v727 = vpop.permute.xlu0 %726
      %728 = vrot.lane.b32.xlu0 %v725, 96
      %v729 = vpop.permute.xlu0 %728
      %730 = vrot.lane.b32.xlu0 %v724, 96
      %v731 = vpop.permute.xlu0 %730
      %vm732 = vcmask 785408
      %v733 = vsel %vm732, %v727, %v729
      %v734 = vsel %vm732, %v729, %v731
      %v736 = vsel %vm234, %v708, 0
      %v739 = vsel %vm238, %v733, 0
      %v742 = vsel %vm238, %v734, 0
      %744 = vmatprep.subr.bf16.mxu0 %v742
      %745 = vmatpush1.bf16.msra.mxu0 %v739
      %746 = vmatprep.subr.bf16.mxu0 0
      %747 = vmatpush1.bf16.msra.mxu0 0
      %748 = vmatprep.subr.bf16.mxu0 0
      %749 = vmatpush1.bf16.msra.mxu0 0
      %750 = vmatprep.subr.bf16.mxu0 0
      %751 = vmatpush1.bf16.msra.mxu0 0
      %752 = vmatprep.subr.bf16.mxu0 0
      %753 = vmatpush1.bf16.msra.mxu0 0
      %754 = vmatprep.subr.bf16.mxu0 0
      %755 = vmatpush1.bf16.msra.mxu0 0
      %756 = vmatprep.subr.bf16.mxu0 0
      %757 = vmatpush1.bf16.msra.mxu0 0
      %758 = vmatprep.subr.bf16.mxu0 0
      %759 = vmatpush1.bf16.msra.mxu0 0
      %760 = vmatprep.subr.bf16.mxu0 0
      %761 = vmatpush1.bf16.msra.mxu0 0
      %762 = vmatprep.subr.bf16.mxu0 0
      %763 = vmatpush1.bf16.msra.mxu0 0
      %764 = vmatprep.subr.bf16.mxu0 0
      %765 = vmatpush1.bf16.msra.mxu0 0
      %766 = vmatprep.subr.bf16.mxu0 0
      %767 = vmatpush1.bf16.msra.mxu0 0
      %768 = vmatprep.subr.bf16.mxu0 0
      %769 = vmatpush1.bf16.msra.mxu0 0
      %770 = vmatprep.subr.bf16.mxu0 0
      %771 = vmatpush1.bf16.msra.mxu0 0
      %772 = vmatprep.subr.bf16.mxu0 0
      %773 = vmatpush1.bf16.msra.mxu0 0
      %774 = vmatprep.subr.bf16.mxu0 0
      %775 = vmatpush1.bf16.msra.mxu0 0
      %776 = vmatprep.mubr.bf16.mxu0 0
      %777 = vmatmul.mubr.bf16.gmra.mrb[0].mxu0 %v736
      %v778 = vpop.f32.mrb[0].mxu0
      %v779 = vadd.f32 0.0, %v778
      %v780 = vpop.f32.mrb[0].mxu0
      %v781 = vadd.f32 0.0, %v780
      %v782 = vpop.f32.mrb[0].mxu0
      %v783 = vadd.f32 0.0, %v782
      %v784 = vpop.f32.mrb[0].mxu0
      %v785 = vadd.f32 0.0, %v784
      %786 = vdwg.mxu0
      %v787 = vadd.f32 %v696, %v779
      %v788 = vadd.f32 %v697, %v781
      %v789 = vadd.f32 %v698, %v783
      %v790 = vadd.f32 %v699, %v785
      %v791 = vld [vmem:[%s215] sm:$0x3f]
      %s792 = scalar_lea.vmem %s1, 56
      %v793 = vld [vmem:[%s792] sm:$0xf]
      %v794 = vld [vmem:[%s792 + $0x4] sm:$0xf]
      %v797 = vunpack.c.l.b16 %v793
      %v798 = vunpack.c.l.b16 %v794
      %v799 = vpack.c.b16 %v798, %v797
      %v801 = vcombine.high %v791, %v791
      %v803 = vunpack.c.l.s4 1983009808
      %v804 = vunpack.c.0.s8 %v803
      %v805 = vlaneseq
      %v806 = vshrl.u32 %v805, 7
      %v807 = vsub.s32 %v804, %v806
      %v808 = vrot.slane %v791, %v807
      %v810 = vunpack.c.l.s4 1983009808
      %v811 = vunpack.c.0.s8 %v810
      %v812 = vlaneseq
      %v813 = vshrl.u32 %v812, 7
      %v814 = vsub.s32 %v811, %v813
      %v815 = vrot.slane %v801, %v814
      %v816 = vcombine.high %v808, %v808
      %817 = vrot.lane.b32.xlu0 %v808, 96
      %v818 = vpop.permute.xlu0 %817
      %819 = vrot.lane.b32.xlu0 %v816, 96
      %v820 = vpop.permute.xlu0 %819
      %821 = vrot.lane.b32.xlu0 %v815, 96
      %v822 = vpop.permute.xlu0 %821
      %v823 = vsel %vm732, %v818, %v820
      %v824 = vsel %vm732, %v820, %v822
      %v826 = vsel %vm234, %v799, 0
      %v829 = vsel %vm238, %v823, 0
      %v832 = vsel %vm238, %v824, 0
      %834 = vmatprep.subr.bf16.mxu0 %v832
      %835 = vmatpush1.bf16.msra.mxu0 %v829
      %836 = vmatprep.subr.bf16.mxu0 0
      %837 = vmatpush1.bf16.msra.mxu0 0
      %838 = vmatprep.subr.bf16.mxu0 0
      %839 = vmatpush1.bf16.msra.mxu0 0
      %840 = vmatprep.subr.bf16.mxu0 0
      %841 = vmatpush1.bf16.msra.mxu0 0
      %842 = vmatprep.subr.bf16.mxu0 0
      %843 = vmatpush1.bf16.msra.mxu0 0
      %844 = vmatprep.subr.bf16.mxu0 0
      %845 = vmatpush1.bf16.msra.mxu0 0
      %846 = vmatprep.subr.bf16.mxu0 0
      %847 = vmatpush1.bf16.msra.mxu0 0
      %848 = vmatprep.subr.bf16.mxu0 0
      %849 = vmatpush1.bf16.msra.mxu0 0
      %850 = vmatprep.subr.bf16.mxu0 0
      %851 = vmatpush1.bf16.msra.mxu0 0
      %852 = vmatprep.subr.bf16.mxu0 0
      %853 = vmatpush1.bf16.msra.mxu0 0
      %854 = vmatprep.subr.bf16.mxu0 0
      %855 = vmatpush1.bf16.msra.mxu0 0
      %856 = vmatprep.subr.bf16.mxu0 0
      %857 = vmatpush1.bf16.msra.mxu0 0
      %858 = vmatprep.subr.bf16.mxu0 0
      %859 = vmatpush1.bf16.msra.mxu0 0
      %860 = vmatprep.subr.bf16.mxu0 0
      %861 = vmatpush1.bf16.msra.mxu0 0
      %862 = vmatprep.subr.bf16.mxu0 0
      %863 = vmatpush1.bf16.msra.mxu0 0
      %864 = vmatprep.subr.bf16.mxu0 0
      %865 = vmatpush1.bf16.msra.mxu0 0
      %866 = vmatprep.mubr.bf16.mxu0 0
      %867 = vmatmul.mubr.bf16.gmra.mrb[0].mxu0 %v826
      %v868 = vpop.f32.mrb[0].mxu0
      %v869 = vadd.f32 0.0, %v868
      %v870 = vpop.f32.mrb[0].mxu0
      %v871 = vadd.f32 0.0, %v870
      %v872 = vpop.f32.mrb[0].mxu0
      %v873 = vadd.f32 0.0, %v872
      %v874 = vpop.f32.mrb[0].mxu0
      %v875 = vadd.f32 0.0, %v874
      %876 = vdwg.mxu0
      %v877 = vadd.f32 %v787, %v869
      %v878 = vadd.f32 %v788, %v871
      %v879 = vadd.f32 %v789, %v873
      %v880 = vadd.f32 %v790, %v875
      %v881 = vld [vmem:[%s354] sm:$0x3f]
      %s882 = scalar_lea.vmem %s1, 64
      %v883 = vld [vmem:[%s882] sm:$0xf]
      %v884 = vld [vmem:[%s882 + $0x4] sm:$0xf]
      %v887 = vunpack.c.l.b16 %v883
      %v888 = vunpack.c.l.b16 %v884
      %v889 = vpack.c.b16 %v888, %v887
      %v891 = vcombine.high %v881, %v881
      %v893 = vunpack.c.l.s4 1983009808
      %v894 = vunpack.c.0.s8 %v893
      %v895 = vlaneseq
      %v896 = vshrl.u32 %v895, 7
      %v897 = vsub.s32 %v894, %v896
      %v898 = vrot.slane %v881, %v897
      %v900 = vunpack.c.l.s4 1983009808
      %v901 = vunpack.c.0.s8 %v900
      %v902 = vlaneseq
      %v903 = vshrl.u32 %v902, 7
      %v904 = vsub.s32 %v901, %v903
      %v905 = vrot.slane %v891, %v904
      %v906 = vcombine.high %v898, %v898
      %907 = vrot.lane.b32.xlu0 %v898, 96
      %v908 = vpop.permute.xlu0 %907
      %909 = vrot.lane.b32.xlu0 %v906, 96
      %v910 = vpop.permute.xlu0 %909
      %911 = vrot.lane.b32.xlu0 %v905, 96
      %v912 = vpop.permute.xlu0 %911
      %v913 = vsel %vm732, %v908, %v910
      %v914 = vsel %vm732, %v910, %v912
      %v916 = vsel %vm234, %v889, 0
      %v919 = vsel %vm238, %v913, 0
      %v922 = vsel %vm238, %v914, 0
      %924 = vmatprep.subr.bf16.mxu0 %v922
      %925 = vmatpush1.bf16.msra.mxu0 %v919
      %926 = vmatprep.subr.bf16.mxu0 0
      %927 = vmatpush1.bf16.msra.mxu0 0
      %928 = vmatprep.subr.bf16.mxu0 0
      %929 = vmatpush1.bf16.msra.mxu0 0
      %930 = vmatprep.subr.bf16.mxu0 0
      %931 = vmatpush1.bf16.msra.mxu0 0
      %932 = vmatprep.subr.bf16.mxu0 0
      %933 = vmatpush1.bf16.msra.mxu0 0
      %934 = vmatprep.subr.bf16.mxu0 0
      %935 = vmatpush1.bf16.msra.mxu0 0
      %936 = vmatprep.subr.bf16.mxu0 0
      %937 = vmatpush1.bf16.msra.mxu0 0
      %938 = vmatprep.subr.bf16.mxu0 0
      %939 = vmatpush1.bf16.msra.mxu0 0
      %940 = vmatprep.subr.bf16.mxu0 0
      %941 = vmatpush1.bf16.msra.mxu0 0
      %942 = vmatprep.subr.bf16.mxu0 0
      %943 = vmatpush1.bf16.msra.mxu0 0
      %944 = vmatprep.subr.bf16.mxu0 0
      %945 = vmatpush1.bf16.msra.mxu0 0
      %946 = vmatprep.subr.bf16.mxu0 0
      %947 = vmatpush1.bf16.msra.mxu0 0
      %948 = vmatprep.subr.bf16.mxu0 0
      %949 = vmatpush1.bf16.msra.mxu0 0
      %950 = vmatprep.subr.bf16.mxu0 0
      %951 = vmatpush1.bf16.msra.mxu0 0
      %952 = vmatprep.subr.bf16.mxu0 0
      %953 = vmatpush1.bf16.msra.mxu0 0
      %954 = vmatprep.subr.bf16.mxu0 0
      %955 = vmatpush1.bf16.msra.mxu0 0
      %956 = vmatprep.mubr.bf16.mxu0 0
      %957 = vmatmul.mubr.bf16.gmra.mrb[0].mxu0 %v916
      %v958 = vpop.f32.mrb[0].mxu0
      %v959 = vadd.f32 0.0, %v958
      %v960 = vpop.f32.mrb[0].mxu0
      %v961 = vadd.f32 0.0, %v960
      %v962 = vpop.f32.mrb[0].mxu0
      %v963 = vadd.f32 0.0, %v962
      %v964 = vpop.f32.mrb[0].mxu0
      %v965 = vadd.f32 0.0, %v964
      %966 = vdwg.mxu0
      %v967 = vadd.f32 %v877, %v959
      %v968 = vadd.f32 %v878, %v961
      %v969 = vadd.f32 %v879, %v963
      %v970 = vadd.f32 %v880, %v965
      %v971 = vld [vmem:[%s2] sm:$0xff]
      %v972 = vld [vmem:[%s2 + $0x8] sm:$0xff]
      %974 = vset.pattern.permute.xlu0 0
      %975 = vperm.xlu0 %974, %v971
      %v976 = vpop.permute.xlu0 %975
      %979 = vset.pattern.permute.xlu0 0
      %980 = vperm.xlu0 %979, %v972
      %v981 = vpop.permute.xlu0 %980
      %v983 = vadd.f32 %v967, %v976
      %v984 = vadd.f32 %v968, %v976
      %v985 = vadd.f32 %v969, %v981
      %v986 = vadd.f32 %v970, %v981
      %v987 = vadd.f32 %v983, %v984
      %988 = vadd.xlane.f32.xlu0 %v987
      %v989 = vpop.xlane.xlu0 %988
      %v990 = vadd.f32 %v985, %v986
      %991 = vadd.xlane.f32.xlu0 %v990
      %v992 = vpop.xlane.xlu0 %991
      %vm993 = vcmask 7168
      %994 = vst.msk [vmem:[%s205] sm:$0xff] %vm993, %v989
      %995 = vst.msk [vmem:[%s205 + $0x8] sm:$0xff] %vm993, %v992
      %v996 = vmul.f32 %v983, %v983
      %v997 = vmul.f32 %v984, %v984
      %v998 = vmul.f32 %v985, %v985
      %v999 = vmul.f32 %v986, %v986
      %v1000 = vadd.f32 %v996, %v997
      %1001 = vadd.xlane.f32.xlu0 %v1000
      %v1002 = vpop.xlane.xlu0 %1001
      %v1003 = vadd.f32 %v998, %v999
      %1004 = vadd.xlane.f32.xlu0 %v1003
      %v1005 = vpop.xlane.xlu0 %1004
      %1006 = vst.msk [vmem:[%s210] sm:$0xff] %vm993, %v1002
      %1007 = vst.msk [vmem:[%s210 + $0x8] sm:$0xff] %vm993, %v1005
      %p1008 = scmp.lt.s32.totalorder %s16, 1
      %s1009 = scalar_select %p1008, %s16, 1
      %s1010 = smul.addr %s1009, 2
      %s1011 = smul.addr %s1010, 8
      %s1012 = scalar_lea.vmem %s3, %s1011
      %p1013 = scmp.lt.s32.totalorder %s16, 1
      %s1014 = scalar_select %p1013, %s16, 1
      %s1015 = smul.addr %s1014, 2
      %s1016 = smul.addr %s1015, 8
      %s1017 = scalar_lea.vmem %s4, %s1016
      // Predicated region
      $region33: #{speech_conv.2} parent=31 // pred_check
        %p1018 = pneg %p102
      $region34: #{speech_conv.2} parent=31 // pred_check_branch
        %1020 = sbr.rel (%p1018) target = $region36
      $region35: #{speech_conv.2} parent=31 // pred_region
        _
      $region36: #{speech_conv.2} parent=31 // pred_fallthru
        _
      // Predicated region
      $region37: #{speech_conv.2} parent=31 // pred_check
        %p1021 = pneg %p128
      $region38: #{speech_conv.2} parent=31 // pred_check_branch
        %1023 = sbr.rel (%p1021) target = $region40
      $region39: #{speech_conv.2} parent=31 // pred_region
        _
      $region40: #{speech_conv.2} parent=31 // pred_fallthru
        _
    $region32: #{speech_conv.2} parent=5 // pred_fallthru
      _
    %p1024 = scmp.le.s32.totalorder 2, %s11
    // Predicated region
    $region41: #{speech_conv.2} parent=5 // pred_check
      %p1025 = pneg %p1024
    $region42: #{speech_conv.2} parent=5 // pred_check_branch
      %1027 = sbr.rel (%p1025) target = $region44
    $region43: #{speech_conv.2} parent=5 // pred_region
      %s1028 = ssub.s32 %s11, 2
      // Predicated region
      $region45: #{speech_conv.2} parent=43 // pred_check
        %p1029 = pneg %p108
      $region46: #{speech_conv.2} parent=43 // pred_check_branch
        %1031 = sbr.rel (%p1029) target = $region48
      $region47: #{speech_conv.2} parent=43 // pred_region
        %p1032 = scmp.lt.s32.totalorder %s17, 1
        %s1033 = scalar_select %p1032, %s17, 1
        %s1034 = smul.addr %s1033, 2
        %s1035 = smul.addr %s1034, 8
        %s1036 = scalar_lea.vmem %s3, %s1035
      $region48: #{speech_conv.2} parent=43 // pred_fallthru
        _
      // Predicated region
      $region49: #{speech_conv.2} parent=43 // pred_check
        %p1037 = pneg %p134
      $region50: #{speech_conv.2} parent=43 // pred_check_branch
        %1039 = sbr.rel (%p1037) target = $region52
      $region51: #{speech_conv.2} parent=43 // pred_region
        %p1040 = scmp.lt.s32.totalorder %s17, 1
        %s1041 = scalar_select %p1040, %s17, 1
        %s1042 = smul.addr %s1041, 2
        %s1043 = smul.addr %s1042, 8
        %s1044 = scalar_lea.vmem %s4, %s1043
      $region52: #{speech_conv.2} parent=43 // pred_fallthru
        _
    $region44: #{speech_conv.2} parent=5 // pred_fallthru
      _
  $region6: #{speech_conv.2} parent=0 // loop_footer
    %s15 = sadd.s32 1, %s11
  $region7: #{speech_conv.2} parent=0 // loop_footer_branch
    %10 = sbr.rel target = $region3
  $region8: #{speech_conv.2} parent=0 // loop_exit
    _

// kernel: speech_conv.3
$region0: #{speech_conv.3}
  #allocation0 [shape = 'u32[]', space=smem, size = 0x4, offset = 0x4, fixed_abs, tag = 'smem constant byte address 0x4 - core index']
  #allocation1 [shape = 'u32[144,128]{1,0:T(1,128)}', space=vmem, size = 0x12000, scoped, tag = 'internal scratch']
  %s0 = inlined_call_operand.vmem [shape: bf16[2,3,4,288], index: 0, kind: input, shape index: {}]
  %s1 = inlined_call_operand.vmem [shape: bf16[9,16,4], index: 1, kind: input, shape index: {}]
  %s2 = inlined_call_operand.vmem [shape: f32[16,1], index: 2, kind: input, shape index: {}]
  %s3 = inlined_call_operand.vmem [shape: f32[16,2], index: 3, kind: input, shape index: {}]
  %s4 = inlined_call_operand.vmem [shape: f32[2,8,256], index: 4, kind: output, shape index: {}]
  %s5 = sld [smem:[#allocation0]]
  $region49: #{speech_conv.3} parent=0
    _
  %s7 = ssub.s32 1, %s5
  %s8 = scalar_select 0, %s7, %s5
  loop: start=0, step=1, limit=4
  $region2: #{speech_conv.3} parent=0 // loop_pre_header
    _
  $region3: #{speech_conv.3} parent=0 // loop_header
    %s10 = sphi 0, %s14
    %p11 = scmp.ge.s32.totalorder %s10, 4
    %s20 = sphi 0, %s22
    %s23 = sphi 0, %s20
    %s24 = sphi 0, %s23
    %s40 = sphi 0, %s24
    %s44 = sphi 0, %s44
    %s46 = sphi 0, %s44
    %s47 = sphi 0, %s46
    %s61 = sphi 0, %s47
    %s65 = sphi 0, %s65
    %s67 = sphi 0, %s65
    %s68 = sphi 0, %s67
    %s82 = sphi 0, %s68
    %s86 = sphi 0, %s86
    %s88 = sphi 0, %s86
    %s89 = sphi 0, %s88
    %s103 = sphi 0, %s89
    %s109 = sphi 0, %s111
    %s112 = sphi 0, %s109
    %s113 = sphi 0, %s112
    %s129 = sphi 0, %s113
  $region4: #{speech_conv.3} parent=0 // loop_header_branch
    %13 = sbr.rel (%p11) target = $region8
  $region5: #{speech_conv.3} parent=0 // loop_body
    %s15 = ssub.s32 %s10, 1
    %s16 = ssub.s32 %s10, 2
    %s17 = sadd.s32 %s10, 1
    %s18 = ssub.s32 %s10, %s17
    %p19 = scmp.eq.s32.totalorder %s18, 0
    %s21 = sadd.s32 %s20, 1
    %s22 = scalar_select %p19, %s20, %s21
    %p25 = pneg %p19
    %p26 = scmp.eq.s32.totalorder %s10, 1
    %p27 = por %p25, %p26
    %p28 = scmp.ne.s32.totalorder %s20, %s23
    %p29 = scmp.eq.s32.totalorder %s10, 0
    %p30 = por %p28, %p29
    %p31 = scmp.ne.s32.totalorder %s20, %s23
    %p32 = scmp.eq.s32.totalorder %s15, 1
    %p33 = por %p31, %p32
    %p34 = scmp.ne.s32.totalorder %s23, %s24
    %p35 = scmp.eq.s32.totalorder %s15, 0
    %p36 = por %p34, %p35
    %p37 = scmp.ne.s32.totalorder %s23, %s24
    %p38 = scmp.eq.s32.totalorder %s16, 1
    %p39 = por %p37, %p38
    %p41 = scmp.ne.s32.totalorder %s24, %s40
    %p42 = scmp.eq.s32.totalorder %s16, 0
    %p43 = por %p41, %p42
    %s45 = sadd.s32 %s44, 1
    %p48 = scmp.eq.s32.totalorder %s10, 1
    %p49 = scmp.ne.s32.totalorder %s44, %s46
    %p50 = scmp.eq.s32.totalorder %s10, 0
    %p51 = por %p49, %p50
    %p52 = scmp.ne.s32.totalorder %s44, %s46
    %p53 = scmp.eq.s32.totalorder %s15, 1
    %p54 = por %p52, %p53
    %p55 = scmp.ne.s32.totalorder %s46, %s47
    %p56 = scmp.eq.s32.totalorder %s15, 0
    %p57 = por %p55, %p56
    %p58 = scmp.ne.s32.totalorder %s46, %s47
    %p59 = scmp.eq.s32.totalorder %s16, 1
    %p60 = por %p58, %p59
    %p62 = scmp.ne.s32.totalorder %s47, %s61
    %p63 = scmp.eq.s32.totalorder %s16, 0
    %p64 = por %p62, %p63
    %s66 = sadd.s32 %s65, 1
    %p69 = scmp.eq.s32.totalorder %s10, 1
    %p70 = scmp.ne.s32.totalorder %s65, %s67
    %p71 = scmp.eq.s32.totalorder %s10, 0
    %p72 = por %p70, %p71
    %p73 = scmp.ne.s32.totalorder %s65, %s67
    %p74 = scmp.eq.s32.totalorder %s15, 1
    %p75 = por %p73, %p74
    %p76 = scmp.ne.s32.totalorder %s67, %s68
    %p77 = scmp.eq.s32.totalorder %s15, 0
    %p78 = por %p76, %p77
    %p79 = scmp.ne.s32.totalorder %s67, %s68
    %p80 = scmp.eq.s32.totalorder %s16, 1
    %p81 = por %p79, %p80
    %p83 = scmp.ne.s32.totalorder %s68, %s82
    %p84 = scmp.eq.s32.totalorder %s16, 0
    %p85 = por %p83, %p84
    %s87 = sadd.s32 %s86, 1
    %p90 = scmp.eq.s32.totalorder %s10, 1
    %p91 = scmp.ne.s32.totalorder %s86, %s88
    %p92 = scmp.eq.s32.totalorder %s10, 0
    %p93 = por %p91, %p92
    %p94 = scmp.ne.s32.totalorder %s86, %s88
    %p95 = scmp.eq.s32.totalorder %s15, 1
    %p96 = por %p94, %p95
    %p97 = scmp.ne.s32.totalorder %s88, %s89
    %p98 = scmp.eq.s32.totalorder %s15, 0
    %p99 = por %p97, %p98
    %p100 = scmp.ne.s32.totalorder %s88, %s89
    %p101 = scmp.eq.s32.totalorder %s16, 1
    %p102 = por %p100, %p101
    %p104 = scmp.ne.s32.totalorder %s89, %s103
    %p105 = scmp.eq.s32.totalorder %s16, 0
    %p106 = por %p104, %p105
    %s107 = ssub.s32 %s10, %s17
    %p108 = scmp.eq.s32.totalorder %s107, 0
    %s110 = sadd.s32 %s109, 1
    %s111 = scalar_select %p108, %s109, %s110
    %p114 = pneg %p108
    %p115 = scmp.eq.s32.totalorder %s10, 1
    %p116 = por %p114, %p115
    %p117 = scmp.ne.s32.totalorder %s109, %s112
    %p118 = scmp.eq.s32.totalorder %s10, 0
    %p119 = por %p117, %p118
    %p120 = scmp.ne.s32.totalorder %s109, %s112
    %p121 = scmp.eq.s32.totalorder %s15, 1
    %p122 = por %p120, %p121
    %p123 = scmp.ne.s32.totalorder %s112, %s113
    %p124 = scmp.eq.s32.totalorder %s15, 0
    %p125 = por %p123, %p124
    %p126 = scmp.ne.s32.totalorder %s112, %s113
    %p127 = scmp.eq.s32.totalorder %s16, 1
    %p128 = por %p126, %p127
    %p130 = scmp.ne.s32.totalorder %s113, %s129
    %p131 = scmp.eq.s32.totalorder %s16, 0
    %p132 = por %p130, %p131
    %p133 = scmp.le.s32.totalorder 1, %s10
    %p134 = scmp.lt.s32.totalorder %s10, 3
    %p135 = pnand %p133, %p134
    %p136 = pneg %p135
    // Predicated region
    $region9: #{speech_conv.3} parent=5 // pred_check
      _
    $region10: #{speech_conv.3} parent=5 // pred_check_branch
      %138 = sbr.rel (%p135) target = $region12
    $region11: #{speech_conv.3} parent=5 // pred_region
      %s139 = ssub.s32 %s10, 1
      // Predicated region
      $region13: #{speech_conv.3} parent=11 // pred_check
        %p140 = pneg %p57
      $region14: #{speech_conv.3} parent=11 // pred_check_branch
        %142 = sbr.rel (%p140) target = $region16
      $region15: #{speech_conv.3} parent=11 // pred_region
        _
      $region16: #{speech_conv.3} parent=11 // pred_fallthru
        _
      // Predicated region
      $region17: #{speech_conv.3} parent=11 // pred_check
        %p143 = pneg %p78
      $region18: #{speech_conv.3} parent=11 // pred_check_branch
        %145 = sbr.rel (%p143) target = $region20
      $region19: #{speech_conv.3} parent=11 // pred_region
        _
      $region20: #{speech_conv.3} parent=11 // pred_fallthru
        _
      // Predicated region
      $region21: #{speech_conv.3} parent=11 // pred_check
        %p146 = pneg %p99
      $region22: #{speech_conv.3} parent=11 // pred_check_branch
        %148 = sbr.rel (%p146) target = $region24
      $region23: #{speech_conv.3} parent=11 // pred_region
        _
      $region24: #{speech_conv.3} parent=11 // pred_fallthru
        _
    $region12: #{speech_conv.3} parent=5 // pred_fallthru
      _
    %p149 = scmp.lt.s32.totalorder %s10, 2
    // Predicated region
    $region25: #{speech_conv.3} parent=5 // pred_check
      %p150 = pneg %p149
    $region26: #{speech_conv.3} parent=5 // pred_check_branch
      %152 = sbr.rel (%p150) target = $region28
    $region27: #{speech_conv.3} parent=5 // pred_region
      // Predicated region
      $region29: #{speech_conv.3} parent=27 // pred_check
        %p153 = pneg %p30
      $region30: #{speech_conv.3} parent=27 // pred_check_branch
        %155 = sbr.rel (%p153) target = $region32
      $region31: #{speech_conv.3} parent=27 // pred_region
        %p156 = scmp.lt.s32.totalorder %s10, 1
        %s157 = scalar_select %p156, %s10, 1
        %s158 = smul.addr %s157, 9
        %s159 = smul.addr %s158, 2
        %s160 = scalar_lea.vmem %s0, %s159
      $region32: #{speech_conv.3} parent=27 // pred_fallthru
        _
    $region28: #{speech_conv.3} parent=5 // pred_fallthru
      _
    %p161 = scmp.le.s32.totalorder 1, %s10
    %p162 = scmp.lt.s32.totalorder %s10, 3
    %p163 = pnand %p161, %p162
    %p164 = pneg %p163
    // Predicated region
    $region33: #{speech_conv.3} parent=5 // pred_check
      _
    $region34: #{speech_conv.3} parent=5 // pred_check_branch
      %166 = sbr.rel (%p163) target = $region36
    $region35: #{speech_conv.3} parent=5 // pred_region
      %s167 = ssub.s32 %s10, 1
      %p168 = scmp.lt.s32.totalorder %s15, 1
      %s169 = scalar_select %p168, %s15, 1
      %s170 = smul.addr %s169, 9
      %s171 = smul.addr %s170, 2
      %s172 = scalar_lea.vmem %s0, %s171
      %p173 = pneg %p36
      %p174 = pneg %p33
      %p175 = pneg %p57
      %p176 = pneg %p54
      %p177 = pneg %p78
      %p178 = pneg %p75
      %p179 = pneg %p99
      %p180 = pneg %p96
      %p181 = pneg %p125
      %p182 = pneg %p122
      %p183 = scmp.lt.s32.totalorder %s15, 1
      %s184 = scalar_select %p183, %s15, 1
      %s185 = smul.addr %s184, 2
      %s186 = smul.addr %s185, 8
      %s187 = scalar_lea.vmem %s4, %s186
      %p188 = scmp.lt.s32.totalorder %s15, 1
      %s189 = scalar_select %p188, %s15, 1
      %s190 = smul.addr %s189, 9
      %s191 = smul.addr %s190, 2
      %s192 = scalar_lea.vmem %s0, %s191
      %p193 = scmp.lt.s32.totalorder %s15, 1
      %s194 = scalar_select %p193, %s15, 1
      %s195 = smul.addr %s194, 2
      %s196 = smul.addr %s195, 8
      %s197 = scalar_lea.vmem %s4, %s196
      %v199 = vld [vmem:[%s192] sm:$0xf]
      %v200 = vld [vmem:[%s1] sm:$0xf]
      %v201 = vld [vmem:[%s1 + $0x4] sm:$0xf]
      %s202 = scalar_lea.vmem %s192, 6
      %v203 = vld [vmem:[%s202] sm:$0xf]
      %s204 = scalar_lea.vmem %s1, 8
      %v205 = vld [vmem:[%s204] sm:$0xf]
      %v206 = vld [vmem:[%s204 + $0x4] sm:$0xf]
      %v209 = vunpack.c.l.b16 %v205
      %v210 = vunpack.c.l.b16 %v206
      %v211 = vpack.c.b16 %v210, %v209
      %v214 = vunpack.c.l.s4 1983009808
      %v215 = vunpack.c.0.s8 %v214
      %v216 = vlaneseq
      %v217 = vshrl.u32 %v216, 7
      %v218 = vsub.s32 %v215, %v217
      %v219 = vrot.slane %v203, %v218
      %v220 = vcombine.high %v219, %v219
      %vm221 = vcmask 31744
      %v223 = vsel %vm221, %v211, 0
      %vm225 = vcmask 1041408
      %v227 = vsel %vm225, %v219, 0
      %v230 = vsel %vm225, %v220, 0
      %232 = vmatprep.subr.bf16.mxu0 %v230
      %233 = vmatpush1.bf16.msra.mxu0 %v227
      %234 = vmatprep.subr.bf16.mxu0 0
      %235 = vmatpush1.bf16.msra.mxu0 0
      %236 = vmatprep.subr.bf16.mxu0 0
      %237 = vmatpush1.bf16.msra.mxu0 0
      %238 = vmatprep.subr.bf16.mxu0 0
      %239 = vmatpush1.bf16.msra.mxu0 0
      %240 = vmatprep.subr.bf16.mxu0 0
      %241 = vmatpush1.bf16.msra.mxu0 0
      %242 = vmatprep.subr.bf16.mxu0 0
      %243 = vmatpush1.bf16.msra.mxu0 0
      %244 = vmatprep.subr.bf16.mxu0 0
      %245 = vmatpush1.bf16.msra.mxu0 0
      %246 = vmatprep.subr.bf16.mxu0 0
      %247 = vmatpush1.bf16.msra.mxu0 0
      %248 = vmatprep.subr.bf16.mxu0 0
      %249 = vmatpush1.bf16.msra.mxu0 0
      %250 = vmatprep.subr.bf16.mxu0 0
      %251 = vmatpush1.bf16.msra.mxu0 0
      %252 = vmatprep.subr.bf16.mxu0 0
      %253 = vmatpush1.bf16.msra.mxu0 0
      %254 = vmatprep.subr.bf16.mxu0 0
      %255 = vmatpush1.bf16.msra.mxu0 0
      %256 = vmatprep.subr.bf16.mxu0 0
      %257 = vmatpush1.bf16.msra.mxu0 0
      %258 = vmatprep.subr.bf16.mxu0 0
      %259 = vmatpush1.bf16.msra.mxu0 0
      %260 = vmatprep.subr.bf16.mxu0 0
      %261 = vmatpush1.bf16.msra.mxu0 0
      %262 = vmatprep.subr.bf16.mxu0 0
      %263 = vmatpush1.bf16.msra.mxu0 0
      %264 = vmatprep.mubr.bf16.mxu0 0
      %265 = vmatmul.mubr.bf16.gmra.mrb[0].mxu0 %v223
      %v266 = vpop.f32.mrb[0].mxu0
      %v267 = vadd.f32 0.0, %v266
      %v268 = vpop.f32.mrb[0].mxu0
      %v269 = vadd.f32 0.0, %v268
      %v270 = vpop.f32.mrb[0].mxu0
      %v271 = vadd.f32 0.0, %v270
      %v272 = vpop.f32.mrb[0].mxu0
      %v273 = vadd.f32 0.0, %v272
      %274 = vdwg.mxu0
      %v277 = vunpack.c.l.b16 %v200
      %v278 = vunpack.c.l.b16 %v201
      %v279 = vpack.c.b16 %v278, %v277
      %v282 = vunpack.c.l.s4 1983009808
      %v283 = vunpack.c.0.s8 %v282
      %v284 = vlaneseq
      %v285 = vshrl.u32 %v284, 7
      %v286 = vsub.s32 %v283, %v285
      %v287 = vrot.slane %v199, %v286
      %v288 = vcombine.high %v287, %v287
      %v290 = vsel %vm221, %v279, 0
      %v293 = vsel %vm225, %v287, 0
      %v296 = vsel %vm225, %v288, 0
      %298 = vmatprep.subr.bf16.mxu0 %v296
      %299 = vmatpush1.bf16.msra.mxu0 %v293
      %300 = vmatprep.subr.bf16.mxu0 0
      %301 = vmatpush1.bf16.msra.mxu0 0
      %302 = vmatprep.subr.bf16.mxu0 0
      %303 = vmatpush1.bf16.msra.mxu0 0
      %304 = vmatprep.subr.bf16.mxu0 0
      %305 = vmatpush1.bf16.msra.mxu0 0
      %306 = vmatprep.subr.bf16.mxu0 0
      %307 = vmatpush1.bf16.msra.mxu0 0
      %308 = vmatprep.subr.bf16.mxu0 0
      %309 = vmatpush1.bf16.msra.mxu0 0
      %310 = vmatprep.subr.bf16.mxu0 0
      %311 = vmatpush1.bf16.msra.mxu0 0
      %312 = vmatprep.subr.bf16.mxu0 0
      %313 = vmatpush1.bf16.msra.mxu0 0
      %314 = vmatprep.subr.bf16.mxu0 0
      %315 = vmatpush1.bf16.msra.mxu0 0
      %316 = vmatprep.subr.bf16.mxu0 0
      %317 = vmatpush1.bf16.msra.mxu0 0
      %318 = vmatprep.subr.bf16.mxu0 0
      %319 = vmatpush1.bf16.msra.mxu0 0
      %320 = vmatprep.subr.bf16.mxu0 0
      %321 = vmatpush1.bf16.msra.mxu0 0
      %322 = vmatprep.subr.bf16.mxu0 0
      %323 = vmatpush1.bf16.msra.mxu0 0
      %324 = vmatprep.subr.bf16.mxu0 0
      %325 = vmatpush1.bf16.msra.mxu0 0
      %326 = vmatprep.subr.bf16.mxu0 0
      %327 = vmatpush1.bf16.msra.mxu0 0
      %328 = vmatprep.subr.bf16.mxu0 0
      %329 = vmatpush1.bf16.msra.mxu0 0
      %330 = vmatprep.mubr.bf16.mxu0 0
      %331 = vmatmul.mubr.bf16.gmra.mrb[0].mxu0 %v290
      %v332 = vpop.f32.mrb[0].mxu0
      %v333 = vadd.f32 %v267, %v332
      %v334 = vpop.f32.mrb[0].mxu0
      %v335 = vadd.f32 %v269, %v334
      %v336 = vpop.f32.mrb[0].mxu0
      %v337 = vadd.f32 %v271, %v336
      %v338 = vpop.f32.mrb[0].mxu0
      %v339 = vadd.f32 %v273, %v338
      %340 = vdwg.mxu0
      %s341 = scalar_lea.vmem %s192, 12
      %v342 = vld [vmem:[%s341] sm:$0xf]
      %s343 = scalar_lea.vmem %s1, 16
      %v344 = vld [vmem:[%s343] sm:$0xf]
      %v345 = vld [vmem:[%s343 + $0x4] sm:$0xf]
      %v348 = vunpack.c.l.b16 %v344
      %v349 = vunpack.c.l.b16 %v345
      %v350 = vpack.c.b16 %v349, %v348
      %v353 = vunpack.c.l.s4 1983009808
      %v354 = vunpack.c.0.s8 %v353
      %v355 = vlaneseq
      %v356 = vshrl.u32 %v355, 7
      %v357 = vsub.s32 %v354, %v356
      %v358 = vrot.slane %v342, %v357
      %v359 = vcombine.high %v358, %v358
      %v361 = vsel %vm221, %v350, 0
      %v364 = vsel %vm225, %v358, 0
      %v367 = vsel %vm225, %v359, 0
      %369 = vmatprep.subr.bf16.mxu0 %v367
      %370 = vmatpush1.bf16.msra.mxu0 %v364
      %371 = vmatprep.subr.bf16.mxu0 0
      %372 = vmatpush1.bf16.msra.mxu0 0
      %373 = vmatprep.subr.bf16.mxu0 0
      %374 = vmatpush1.bf16.msra.mxu0 0
      %375 = vmatprep.subr.bf16.mxu0 0
      %376 = vmatpush1.bf16.msra.mxu0 0
      %377 = vmatprep.subr.bf16.mxu0 0
      %378 = vmatpush1.bf16.msra.mxu0 0
      %379 = vmatprep.subr.bf16.mxu0 0
      %380 = vmatpush1.bf16.msra.mxu0 0
      %381 = vmatprep.subr.bf16.mxu0 0
      %382 = vmatpush1.bf16.msra.mxu0 0
      %383 = vmatprep.subr.bf16.mxu0 0
      %384 = vmatpush1.bf16.msra.mxu0 0
      %385 = vmatprep.subr.bf16.mxu0 0
      %386 = vmatpush1.bf16.msra.mxu0 0
      %387 = vmatprep.subr.bf16.mxu0 0
      %388 = vmatpush1.bf16.msra.mxu0 0
      %389 = vmatprep.subr.bf16.mxu0 0
      %390 = vmatpush1.bf16.msra.mxu0 0
      %391 = vmatprep.subr.bf16.mxu0 0
      %392 = vmatpush1.bf16.msra.mxu0 0
      %393 = vmatprep.subr.bf16.mxu0 0
      %394 = vmatpush1.bf16.msra.mxu0 0
      %395 = vmatprep.subr.bf16.mxu0 0
      %396 = vmatpush1.bf16.msra.mxu0 0
      %397 = vmatprep.subr.bf16.mxu0 0
      %398 = vmatpush1.bf16.msra.mxu0 0
      %399 = vmatprep.subr.bf16.mxu0 0
      %400 = vmatpush1.bf16.msra.mxu0 0
      %401 = vmatprep.mubr.bf16.mxu0 0
      %402 = vmatmul.mubr.bf16.gmra.mrb[0].mxu0 %v361
      %v403 = vpop.f32.mrb[0].mxu0
      %v404 = vadd.f32 0.0, %v403
      %v405 = vpop.f32.mrb[0].mxu0
      %v406 = vadd.f32 0.0, %v405
      %v407 = vpop.f32.mrb[0].mxu0
      %v408 = vadd.f32 0.0, %v407
      %v409 = vpop.f32.mrb[0].mxu0
      %v410 = vadd.f32 0.0, %v409
      %411 = vdwg.mxu0
      %v412 = vadd.f32 %v333, %v404
      %v413 = vadd.f32 %v335, %v406
      %v414 = vadd.f32 %v337, %v408
      %v415 = vadd.f32 %v339, %v410
      %v416 = vld [vmem:[%s192] sm:$0x3f]
      %s417 = scalar_lea.vmem %s1, 24
      %v418 = vld [vmem:[%s417] sm:$0xf]
      %v419 = vld [vmem:[%s417 + $0x4] sm:$0xf]
      %v422 = vunpack.c.l.b16 %v418
      %v423 = vunpack.c.l.b16 %v419
      %v424 = vpack.c.b16 %v423, %v422
      %v426 = vcombine.high %v416, %v416
      %v428 = vunpack.c.l.s4 1983009808
      %v429 = vunpack.c.0.s8 %v428
      %v430 = vlaneseq
      %v431 = vshrl.u32 %v430, 7
      %v432 = vsub.s32 %v429, %v431
      %v433 = vrot.slane %v416, %v432
      %v435 = vunpack.c.l.s4 1983009808
      %v436 = vunpack.c.0.s8 %v435
      %v437 = vlaneseq
      %v438 = vshrl.u32 %v437, 7
      %v439 = vsub.s32 %v436, %v438
      %v440 = vrot.slane %v426, %v439
      %v441 = vcombine.high %v433, %v433
      %442 = vrot.lane.b32.xlu0 %v433, 112
      %v443 = vpop.permute.xlu0 %442
      %444 = vrot.lane.b32.xlu0 %v441, 112
      %v445 = vpop.permute.xlu0 %444
      %446 = vrot.lane.b32.xlu0 %v440, 112
      %v447 = vpop.permute.xlu0 %446
      %vm448 = vcmask 916480
      %v449 = vsel %vm448, %v443, %v445
      %v450 = vsel %vm448, %v445, %v447
      %v452 = vsel %vm221, %v424, 0
      %v455 = vsel %vm225, %v449, 0
      %v458 = vsel %vm225, %v450, 0
      %460 = vmatprep.subr.bf16.mxu0 %v458
      %461 = vmatpush1.bf16.msra.mxu0 %v455
      %462 = vmatprep.subr.bf16.mxu0 0
      %463 = vmatpush1.bf16.msra.mxu0 0
      %464 = vmatprep.subr.bf16.mxu0 0
      %465 = vmatpush1.bf16.msra.mxu0 0
      %466 = vmatprep.subr.bf16.mxu0 0
      %467 = vmatpush1.bf16.msra.mxu0 0
      %468 = vmatprep.subr.bf16.mxu0 0
      %469 = vmatpush1.bf16.msra.mxu0 0
      %470 = vmatprep.subr.bf16.mxu0 0
      %471 = vmatpush1.bf16.msra.mxu0 0
      %472 = vmatprep.subr.bf16.mxu0 0
      %473 = vmatpush1.bf16.msra.mxu0 0
      %474 = vmatprep.subr.bf16.mxu0 0
      %475 = vmatpush1.bf16.msra.mxu0 0
      %476 = vmatprep.subr.bf16.mxu0 0
      %477 = vmatpush1.bf16.msra.mxu0 0
      %478 = vmatprep.subr.bf16.mxu0 0
      %479 = vmatpush1.bf16.msra.mxu0 0
      %480 = vmatprep.subr.bf16.mxu0 0
      %481 = vmatpush1.bf16.msra.mxu0 0
      %482 = vmatprep.subr.bf16.mxu0 0
      %483 = vmatpush1.bf16.msra.mxu0 0
      %484 = vmatprep.subr.bf16.mxu0 0
      %485 = vmatpush1.bf16.msra.mxu0 0
      %486 = vmatprep.subr.bf16.mxu0 0
      %487 = vmatpush1.bf16.msra.mxu0 0
      %488 = vmatprep.subr.bf16.mxu0 0
      %489 = vmatpush1.bf16.msra.mxu0 0
      %490 = vmatprep.subr.bf16.mxu0 0
      %491 = vmatpush1.bf16.msra.mxu0 0
      %492 = vmatprep.mubr.bf16.mxu0 0
      %493 = vmatmul.mubr.bf16.gmra.mrb[0].mxu0 %v452
      %v494 = vpop.f32.mrb[0].mxu0
      %v495 = vadd.f32 0.0, %v494
      %v496 = vpop.f32.mrb[0].mxu0
      %v497 = vadd.f32 0.0, %v496
      %v498 = vpop.f32.mrb[0].mxu0
      %v499 = vadd.f32 0.0, %v498
      %v500 = vpop.f32.mrb[0].mxu0
      %v501 = vadd.f32 0.0, %v500
      %502 = vdwg.mxu0
      %v503 = vadd.f32 %v412, %v495
      %v504 = vadd.f32 %v413, %v497
      %v505 = vadd.f32 %v414, %v499
      %v506 = vadd.f32 %v415, %v501
      %v507 = vld [vmem:[%s202] sm:$0x3f]
      %s508 = scalar_lea.vmem %s1, 32
      %v509 = vld [vmem:[%s508] sm:$0xf]
      %v510 = vld [vmem:[%s508 + $0x4] sm:$0xf]
      %v513 = vunpack.c.l.b16 %v509
      %v514 = vunpack.c.l.b16 %v510
      %v515 = vpack.c.b16 %v514, %v513
      %v517 = vcombine.high %v507, %v507
      %v519 = vunpack.c.l.s4 1983009808
      %v520 = vunpack.c.0.s8 %v519
      %v521 = vlaneseq
      %v522 = vshrl.u32 %v521, 7
      %v523 = vsub.s32 %v520, %v522
      %v524 = vrot.slane %v507, %v523
      %v526 = vunpack.c.l.s4 1983009808
      %v527 = vunpack.c.0.s8 %v526
      %v528 = vlaneseq
      %v529 = vshrl.u32 %v528, 7
      %v530 = vsub.s32 %v527, %v529
      %v531 = vrot.slane %v517, %v530
      %v532 = vcombine.high %v524, %v524
      %533 = vrot.lane.b32.xlu0 %v524, 112
      %v534 = vpop.permute.xlu0 %533
      %535 = vrot.lane.b32.xlu0 %v532, 112
      %v536 = vpop.permute.xlu0 %535
      %537 = vrot.lane.b32.xlu0 %v531, 112
      %v538 = vpop.permute.xlu0 %537
      %v539 = vsel %vm448, %v534, %v536
      %v540 = vsel %vm448, %v536, %v538
      %v542 = vsel %vm221, %v515, 0
      %v545 = vsel %vm225, %v539, 0
      %v548 = vsel %vm225, %v540, 0
      %550 = vmatprep.subr.bf16.mxu0 %v548
      %551 = vmatpush1.bf16.msra.mxu0 %v545
      %552 = vmatprep.subr.bf16.mxu0 0
      %553 = vmatpush1.bf16.msra.mxu0 0
      %554 = vmatprep.subr.bf16.mxu0 0
      %555 = vmatpush1.bf16.msra.mxu0 0
      %556 = vmatprep.subr.bf16.mxu0 0
      %557 = vmatpush1.bf16.msra.mxu0 0
      %558 = vmatprep.subr.bf16.mxu0 0
      %559 = vmatpush1.bf16.msra.mxu0 0
      %560 = vmatprep.subr.bf16.mxu0 0
      %561 = vmatpush1.bf16.msra.mxu0 0
      %562 = vmatprep.subr.bf16.mxu0 0
      %563 = vmatpush1.bf16.msra.mxu0 0
      %564 = vmatprep.subr.bf16.mxu0 0
      %565 = vmatpush1.bf16.msra.mxu0 0
      %566 = vmatprep.subr.bf16.mxu0 0
      %567 = vmatpush1.bf16.msra.mxu0 0
      %568 = vmatprep.subr.bf16.mxu0 0
      %569 = vmatpush1.bf16.msra.mxu0 0
      %570 = vmatprep.subr.bf16.mxu0 0
      %571 = vmatpush1.bf16.msra.mxu0 0
      %572 = vmatprep.subr.bf16.mxu0 0
      %573 = vmatpush1.bf16.msra.mxu0 0
      %574 = vmatprep.subr.bf16.mxu0 0
      %575 = vmatpush1.bf16.msra.mxu0 0
      %576 = vmatprep.subr.bf16.mxu0 0
      %577 = vmatpush1.bf16.msra.mxu0 0
      %578 = vmatprep.subr.bf16.mxu0 0
      %579 = vmatpush1.bf16.msra.mxu0 0
      %580 = vmatprep.subr.bf16.mxu0 0
      %581 = vmatpush1.bf16.msra.mxu0 0
      %582 = vmatprep.mubr.bf16.mxu0 0
      %583 = vmatmul.mubr.bf16.gmra.mrb[0].mxu0 %v542
      %v584 = vpop.f32.mrb[0].mxu0
      %v585 = vadd.f32 0.0, %v584
      %v586 = vpop.f32.mrb[0].mxu0
      %v587 = vadd.f32 0.0, %v586
      %v588 = vpop.f32.mrb[0].mxu0
      %v589 = vadd.f32 0.0, %v588
      %v590 = vpop.f32.mrb[0].mxu0
      %v591 = vadd.f32 0.0, %v590
      %592 = vdwg.mxu0
      %v593 = vadd.f32 %v503, %v585
      %v594 = vadd.f32 %v504, %v587
      %v595 = vadd.f32 %v505, %v589
      %v596 = vadd.f32 %v506, %v591
      %v597 = vld [vmem:[%s341] sm:$0x3f]
      %s598 = scalar_lea.vmem %s1, 40
      %v599 = vld [vmem:[%s598] sm:$0xf]
      %v600 = vld [vmem:[%s598 + $0x4] sm:$0xf]
      %v603 = vunpack.c.l.b16 %v599
      %v604 = vunpack.c.l.b16 %v600
      %v605 = vpack.c.b16 %v604, %v603
      %v607 = vcombine.high %v597, %v597
      %v609 = vunpack.c.l.s4 1983009808
      %v610 = vunpack.c.0.s8 %v609
      %v611 = vlaneseq
      %v612 = vshrl.u32 %v611, 7
      %v613 = vsub.s32 %v610, %v612
      %v614 = vrot.slane %v597, %v613
      %v616 = vunpack.c.l.s4 1983009808
      %v617 = vunpack.c.0.s8 %v616
      %v618 = vlaneseq
      %v619 = vshrl.u32 %v618, 7
      %v620 = vsub.s32 %v617, %v619
      %v621 = vrot.slane %v607, %v620
      %v622 = vcombine.high %v614, %v614
      %623 = vrot.lane.b32.xlu0 %v614, 112
      %v624 = vpop.permute.xlu0 %623
      %625 = vrot.lane.b32.xlu0 %v622, 112
      %v626 = vpop.permute.xlu0 %625
      %627 = vrot.lane.b32.xlu0 %v621, 112
      %v628 = vpop.permute.xlu0 %627
      %v629 = vsel %vm448, %v624, %v626
      %v630 = vsel %vm448, %v626, %v628
      %v632 = vsel %vm221, %v605, 0
      %v635 = vsel %vm225, %v629, 0
      %v638 = vsel %vm225, %v630, 0
      %640 = vmatprep.subr.bf16.mxu0 %v638
      %641 = vmatpush1.bf16.msra.mxu0 %v635
      %642 = vmatprep.subr.bf16.mxu0 0
      %643 = vmatpush1.bf16.msra.mxu0 0
      %644 = vmatprep.subr.bf16.mxu0 0
      %645 = vmatpush1.bf16.msra.mxu0 0
      %646 = vmatprep.subr.bf16.mxu0 0
      %647 = vmatpush1.bf16.msra.mxu0 0
      %648 = vmatprep.subr.bf16.mxu0 0
      %649 = vmatpush1.bf16.msra.mxu0 0
      %650 = vmatprep.subr.bf16.mxu0 0
      %651 = vmatpush1.bf16.msra.mxu0 0
      %652 = vmatprep.subr.bf16.mxu0 0
      %653 = vmatpush1.bf16.msra.mxu0 0
      %654 = vmatprep.subr.bf16.mxu0 0
      %655 = vmatpush1.bf16.msra.mxu0 0
      %656 = vmatprep.subr.bf16.mxu0 0
      %657 = vmatpush1.bf16.msra.mxu0 0
      %658 = vmatprep.subr.bf16.mxu0 0
      %659 = vmatpush1.bf16.msra.mxu0 0
      %660 = vmatprep.subr.bf16.mxu0 0
      %661 = vmatpush1.bf16.msra.mxu0 0
      %662 = vmatprep.subr.bf16.mxu0 0
      %663 = vmatpush1.bf16.msra.mxu0 0
      %664 = vmatprep.subr.bf16.mxu0 0
      %665 = vmatpush1.bf16.msra.mxu0 0
      %666 = vmatprep.subr.bf16.mxu0 0
      %667 = vmatpush1.bf16.msra.mxu0 0
      %668 = vmatprep.subr.bf16.mxu0 0
      %669 = vmatpush1.bf16.msra.mxu0 0
      %670 = vmatprep.subr.bf16.mxu0 0
      %671 = vmatpush1.bf16.msra.mxu0 0
      %672 = vmatprep.mubr.bf16.mxu0 0
      %673 = vmatmul.mubr.bf16.gmra.mrb[0].mxu0 %v632
      %v674 = vpop.f32.mrb[0].mxu0
      %v675 = vadd.f32 0.0, %v674
      %v676 = vpop.f32.mrb[0].mxu0
      %v677 = vadd.f32 0.0, %v676
      %v678 = vpop.f32.mrb[0].mxu0
      %v679 = vadd.f32 0.0, %v678
      %v680 = vpop.f32.mrb[0].mxu0
      %v681 = vadd.f32 0.0, %v680
      %682 = vdwg.mxu0
      %v683 = vadd.f32 %v593, %v675
      %v684 = vadd.f32 %v594, %v677
      %v685 = vadd.f32 %v595, %v679
      %v686 = vadd.f32 %v596, %v681
      %v687 = vld [vmem:[%s192] sm:$0x3f]
      %s688 = scalar_lea.vmem %s1, 48
      %v689 = vld [vmem:[%s688] sm:$0xf]
      %v690 = vld [vmem:[%s688 + $0x4] sm:$0xf]
      %v693 = vunpack.c.l.b16 %v689
      %v694 = vunpack.c.l.b16 %v690
      %v695 = vpack.c.b16 %v694, %v693
      %v697 = vcombine.high %v687, %v687
      %v699 = vunpack.c.l.s4 1983009808
      %v700 = vunpack.c.0.s8 %v699
      %v701 = vlaneseq
      %v702 = vshrl.u32 %v701, 7
      %v703 = vsub.s32 %v700, %v702
      %v704 = vrot.slane %v687, %v703
      %v706 = vunpack.c.l.s4 1983009808
      %v707 = vunpack.c.0.s8 %v706
      %v708 = vlaneseq
      %v709 = vshrl.u32 %v708, 7
      %v710 = vsub.s32 %v707, %v709
      %v711 = vrot.slane %v697, %v710
      %v712 = vcombine.high %v704, %v704
      %713 = vrot.lane.b32.xlu0 %v704, 96
      %v714 = vpop.permute.xlu0 %713
      %715 = vrot.lane.b32.xlu0 %v712, 96
      %v716 = vpop.permute.xlu0 %715
      %717 = vrot.lane.b32.xlu0 %v711, 96
      %v718 = vpop.permute.xlu0 %717
      %vm719 = vcmask 785408
      %v720 = vsel %vm719, %v714, %v716
      %v721 = vsel %vm719, %v716, %v718
      %v723 = vsel %vm221, %v695, 0
      %v726 = vsel %vm225, %v720, 0
      %v729 = vsel %vm225, %v721, 0
      %731 = vmatprep.subr.bf16.mxu0 %v729
      %732 = vmatpush1.bf16.msra.mxu0 %v726
      %733 = vmatprep.subr.bf16.mxu0 0
      %734 = vmatpush1.bf16.msra.mxu0 0
      %735 = vmatprep.subr.bf16.mxu0 0
      %736 = vmatpush1.bf16.msra.mxu0 0
      %737 = vmatprep.subr.bf16.mxu0 0
      %738 = vmatpush1.bf16.msra.mxu0 0
      %739 = vmatprep.subr.bf16.mxu0 0
      %740 = vmatpush1.bf16.msra.mxu0 0
      %741 = vmatprep.subr.bf16.mxu0 0
      %742 = vmatpush1.bf16.msra.mxu0 0
      %743 = vmatprep.subr.bf16.mxu0 0
      %744 = vmatpush1.bf16.msra.mxu0 0
      %745 = vmatprep.subr.bf16.mxu0 0
      %746 = vmatpush1.bf16.msra.mxu0 0
      %747 = vmatprep.subr.bf16.mxu0 0
      %748 = vmatpush1.bf16.msra.mxu0 0
      %749 = vmatprep.subr.bf16.mxu0 0
      %750 = vmatpush1.bf16.msra.mxu0 0
      %751 = vmatprep.subr.bf16.mxu0 0
      %752 = vmatpush1.bf16.msra.mxu0 0
      %753 = vmatprep.subr.bf16.mxu0 0
      %754 = vmatpush1.bf16.msra.mxu0 0
      %755 = vmatprep.subr.bf16.mxu0 0
      %756 = vmatpush1.bf16.msra.mxu0 0
      %757 = vmatprep.subr.bf16.mxu0 0
      %758 = vmatpush1.bf16.msra.mxu0 0
      %759 = vmatprep.subr.bf16.mxu0 0
      %760 = vmatpush1.bf16.msra.mxu0 0
      %761 = vmatprep.subr.bf16.mxu0 0
      %762 = vmatpush1.bf16.msra.mxu0 0
      %763 = vmatprep.mubr.bf16.mxu0 0
      %764 = vmatmul.mubr.bf16.gmra.mrb[0].mxu0 %v723
      %v765 = vpop.f32.mrb[0].mxu0
      %v766 = vadd.f32 0.0, %v765
      %v767 = vpop.f32.mrb[0].mxu0
      %v768 = vadd.f32 0.0, %v767
      %v769 = vpop.f32.mrb[0].mxu0
      %v770 = vadd.f32 0.0, %v769
      %v771 = vpop.f32.mrb[0].mxu0
      %v772 = vadd.f32 0.0, %v771
      %773 = vdwg.mxu0
      %v774 = vadd.f32 %v683, %v766
      %v775 = vadd.f32 %v684, %v768
      %v776 = vadd.f32 %v685, %v770
      %v777 = vadd.f32 %v686, %v772
      %v778 = vld [vmem:[%s202] sm:$0x3f]
      %s779 = scalar_lea.vmem %s1, 56
      %v780 = vld [vmem:[%s779] sm:$0xf]
      %v781 = vld [vmem:[%s779 + $0x4] sm:$0xf]
      %v784 = vunpack.c.l.b16 %v780
      %v785 = vunpack.c.l.b16 %v781
      %v786 = vpack.c.b16 %v785, %v784
      %v788 = vcombine.high %v778, %v778
      %v790 = vunpack.c.l.s4 1983009808
      %v791 = vunpack.c.0.s8 %v790
      %v792 = vlaneseq
      %v793 = vshrl.u32 %v792, 7
      %v794 = vsub.s32 %v791, %v793
      %v795 = vrot.slane %v778, %v794
      %v797 = vunpack.c.l.s4 1983009808
      %v798 = vunpack.c.0.s8 %v797
      %v799 = vlaneseq
      %v800 = vshrl.u32 %v799, 7
      %v801 = vsub.s32 %v798, %v800
      %v802 = vrot.slane %v788, %v801
      %v803 = vcombine.high %v795, %v795
      %804 = vrot.lane.b32.xlu0 %v795, 96
      %v805 = vpop.permute.xlu0 %804
      %806 = vrot.lane.b32.xlu0 %v803, 96
      %v807 = vpop.permute.xlu0 %806
      %808 = vrot.lane.b32.xlu0 %v802, 96
      %v809 = vpop.permute.xlu0 %808
      %v810 = vsel %vm719, %v805, %v807
      %v811 = vsel %vm719, %v807, %v809
      %v813 = vsel %vm221, %v786, 0
      %v816 = vsel %vm225, %v810, 0
      %v819 = vsel %vm225, %v811, 0
      %821 = vmatprep.subr.bf16.mxu0 %v819
      %822 = vmatpush1.bf16.msra.mxu0 %v816
      %823 = vmatprep.subr.bf16.mxu0 0
      %824 = vmatpush1.bf16.msra.mxu0 0
      %825 = vmatprep.subr.bf16.mxu0 0
      %826 = vmatpush1.bf16.msra.mxu0 0
      %827 = vmatprep.subr.bf16.mxu0 0
      %828 = vmatpush1.bf16.msra.mxu0 0
      %829 = vmatprep.subr.bf16.mxu0 0
      %830 = vmatpush1.bf16.msra.mxu0 0
      %831 = vmatprep.subr.bf16.mxu0 0
      %832 = vmatpush1.bf16.msra.mxu0 0
      %833 = vmatprep.subr.bf16.mxu0 0
      %834 = vmatpush1.bf16.msra.mxu0 0
      %835 = vmatprep.subr.bf16.mxu0 0
      %836 = vmatpush1.bf16.msra.mxu0 0
      %837 = vmatprep.subr.bf16.mxu0 0
      %838 = vmatpush1.bf16.msra.mxu0 0
      %839 = vmatprep.subr.bf16.mxu0 0
      %840 = vmatpush1.bf16.msra.mxu0 0
      %841 = vmatprep.subr.bf16.mxu0 0
      %842 = vmatpush1.bf16.msra.mxu0 0
      %843 = vmatprep.subr.bf16.mxu0 0
      %844 = vmatpush1.bf16.msra.mxu0 0
      %845 = vmatprep.subr.bf16.mxu0 0
      %846 = vmatpush1.bf16.msra.mxu0 0
      %847 = vmatprep.subr.bf16.mxu0 0
      %848 = vmatpush1.bf16.msra.mxu0 0
      %849 = vmatprep.subr.bf16.mxu0 0
      %850 = vmatpush1.bf16.msra.mxu0 0
      %851 = vmatprep.subr.bf16.mxu0 0
      %852 = vmatpush1.bf16.msra.mxu0 0
      %853 = vmatprep.mubr.bf16.mxu0 0
      %854 = vmatmul.mubr.bf16.gmra.mrb[0].mxu0 %v813
      %v855 = vpop.f32.mrb[0].mxu0
      %v856 = vadd.f32 0.0, %v855
      %v857 = vpop.f32.mrb[0].mxu0
      %v858 = vadd.f32 0.0, %v857
      %v859 = vpop.f32.mrb[0].mxu0
      %v860 = vadd.f32 0.0, %v859
      %v861 = vpop.f32.mrb[0].mxu0
      %v862 = vadd.f32 0.0, %v861
      %863 = vdwg.mxu0
      %v864 = vadd.f32 %v774, %v856
      %v865 = vadd.f32 %v775, %v858
      %v866 = vadd.f32 %v776, %v860
      %v867 = vadd.f32 %v777, %v862
      %v868 = vld [vmem:[%s341] sm:$0x3f]
      %s869 = scalar_lea.vmem %s1, 64
      %v870 = vld [vmem:[%s869] sm:$0xf]
      %v871 = vld [vmem:[%s869 + $0x4] sm:$0xf]
      %v874 = vunpack.c.l.b16 %v870
      %v875 = vunpack.c.l.b16 %v871
      %v876 = vpack.c.b16 %v875, %v874
      %v878 = vcombine.high %v868, %v868
      %v880 = vunpack.c.l.s4 1983009808
      %v881 = vunpack.c.0.s8 %v880
      %v882 = vlaneseq
      %v883 = vshrl.u32 %v882, 7
      %v884 = vsub.s32 %v881, %v883
      %v885 = vrot.slane %v868, %v884
      %v887 = vunpack.c.l.s4 1983009808
      %v888 = vunpack.c.0.s8 %v887
      %v889 = vlaneseq
      %v890 = vshrl.u32 %v889, 7
      %v891 = vsub.s32 %v888, %v890
      %v892 = vrot.slane %v878, %v891
      %v893 = vcombine.high %v885, %v885
      %894 = vrot.lane.b32.xlu0 %v885, 96
      %v895 = vpop.permute.xlu0 %894
      %896 = vrot.lane.b32.xlu0 %v893, 96
      %v897 = vpop.permute.xlu0 %896
      %898 = vrot.lane.b32.xlu0 %v892, 96
      %v899 = vpop.permute.xlu0 %898
      %v900 = vsel %vm719, %v895, %v897
      %v901 = vsel %vm719, %v897, %v899
      %v903 = vsel %vm221, %v876, 0
      %v906 = vsel %vm225, %v900, 0
      %v909 = vsel %vm225, %v901, 0
      %911 = vmatprep.subr.bf16.mxu0 %v909
      %912 = vmatpush1.bf16.msra.mxu0 %v906
      %913 = vmatprep.subr.bf16.mxu0 0
      %914 = vmatpush1.bf16.msra.mxu0 0
      %915 = vmatprep.subr.bf16.mxu0 0
      %916 = vmatpush1.bf16.msra.mxu0 0
      %917 = vmatprep.subr.bf16.mxu0 0
      %918 = vmatpush1.bf16.msra.mxu0 0
      %919 = vmatprep.subr.bf16.mxu0 0
      %920 = vmatpush1.bf16.msra.mxu0 0
      %921 = vmatprep.subr.bf16.mxu0 0
      %922 = vmatpush1.bf16.msra.mxu0 0
      %923 = vmatprep.subr.bf16.mxu0 0
      %924 = vmatpush1.bf16.msra.mxu0 0
      %925 = vmatprep.subr.bf16.mxu0 0
      %926 = vmatpush1.bf16.msra.mxu0 0
      %927 = vmatprep.subr.bf16.mxu0 0
      %928 = vmatpush1.bf16.msra.mxu0 0
      %929 = vmatprep.subr.bf16.mxu0 0
      %930 = vmatpush1.bf16.msra.mxu0 0
      %931 = vmatprep.subr.bf16.mxu0 0
      %932 = vmatpush1.bf16.msra.mxu0 0
      %933 = vmatprep.subr.bf16.mxu0 0
      %934 = vmatpush1.bf16.msra.mxu0 0
      %935 = vmatprep.subr.bf16.mxu0 0
      %936 = vmatpush1.bf16.msra.mxu0 0
      %937 = vmatprep.subr.bf16.mxu0 0
      %938 = vmatpush1.bf16.msra.mxu0 0
      %939 = vmatprep.subr.bf16.mxu0 0
      %940 = vmatpush1.bf16.msra.mxu0 0
      %941 = vmatprep.subr.bf16.mxu0 0
      %942 = vmatpush1.bf16.msra.mxu0 0
      %943 = vmatprep.mubr.bf16.mxu0 0
      %944 = vmatmul.mubr.bf16.gmra.mrb[0].mxu0 %v903
      %v945 = vpop.f32.mrb[0].mxu0
      %v946 = vadd.f32 0.0, %v945
      %v947 = vpop.f32.mrb[0].mxu0
      %v948 = vadd.f32 0.0, %v947
      %v949 = vpop.f32.mrb[0].mxu0
      %v950 = vadd.f32 0.0, %v949
      %v951 = vpop.f32.mrb[0].mxu0
      %v952 = vadd.f32 0.0, %v951
      %953 = vdwg.mxu0
      %v954 = vadd.f32 %v864, %v946
      %v955 = vadd.f32 %v865, %v948
      %v956 = vadd.f32 %v866, %v950
      %v957 = vadd.f32 %v867, %v952
      %v958 = vld [vmem:[%s2] sm:$0xff]
      %v959 = vld [vmem:[%s2 + $0x8] sm:$0xff]
      %961 = vset.pattern.permute.xlu0 0
      %962 = vperm.xlu0 %961, %v958
      %v963 = vpop.permute.xlu0 %962
      %966 = vset.pattern.permute.xlu0 0
      %967 = vperm.xlu0 %966, %v959
      %v968 = vpop.permute.xlu0 %967
      %v970 = vadd.f32 %v954, %v963
      %v971 = vadd.f32 %v955, %v963
      %v972 = vadd.f32 %v956, %v968
      %v973 = vadd.f32 %v957, %v968
      %v974 = vld [vmem:[%s3] sm:$0xff]
      %v975 = vld [vmem:[%s3 + $0x8] sm:$0xff]
      %977 = vset.pattern.permute.xlu0 0
      %978 = vperm.xlu0 %977, %v974
      %v979 = vpop.permute.xlu0 %978
      %982 = vset.pattern.permute.xlu0 0
      %983 = vperm.xlu0 %982, %v975
      %v984 = vpop.permute.xlu0 %983
      %v986 = vmul.f32 %v970, %v979
      %v987 = vmul.f32 %v971, %v979
      %v988 = vmul.f32 %v972, %v984
      %v989 = vmul.f32 %v973, %v984
      %990 = vset.pattern.permute.xlu0 1
      %991 = vperm.xlu0 %990, %v974
      %v992 = vpop.permute.xlu0 %991
      %994 = vset.pattern.permute.xlu0 1
      %995 = vperm.xlu0 %994, %v975
      %v996 = vpop.permute.xlu0 %995
      %v998 = vadd.f32 %v986, %v992
      %v999 = vadd.f32 %v987, %v992
      %v1000 = vadd.f32 %v988, %v996
      %v1001 = vadd.f32 %v989, %v996
      %v1002 = vxor.u32 %v1000, 2147483648
      %v1003 = vxor.u32 %v1001, 2147483648
      %v1004 = vmul.f32 %v1002, 1.442695
      %v1005 = vpow.pop %v1004
      %v1006 = vmul.f32 %v1003, 1.442695
      %v1007 = vpow.pop %v1006
      %v1008 = vadd.f32 %v1005, 1.0
      %v1009 = vadd.f32 %v1007, 1.0
      %v1010 = vrcp.pop %v1008
      %v1011 = vmul.f32 1.0, %v1010
      %v1012 = vrcp.pop %v1009
      %v1013 = vmul.f32 1.0, %v1012
      %v1014 = vmul.f32 %v998, %v1011
      %v1015 = vmul.f32 %v999, %v1013
      %1016 = vst [vmem:[%s197] sm:$0xff] %v1014
      %1017 = vst [vmem:[%s197 + $0x8] sm:$0xff] %v1015
      %p1018 = scmp.lt.s32.totalorder %s15, 1
      %s1019 = scalar_select %p1018, %s15, 1
      %s1020 = smul.addr %s1019, 2
      %s1021 = smul.addr %s1020, 8
      %s1022 = scalar_lea.vmem %s4, %s1021
      // Predicated region
      $region37: #{speech_conv.3} parent=35 // pred_check
        %p1023 = pneg %p122
      $region38: #{speech_conv.3} parent=35 // pred_check_branch
        %1025 = sbr.rel (%p1023) target = $region40
      $region39: #{speech_conv.3} parent=35 // pred_region
        _
      $region40: #{speech_conv.3} parent=35 // pred_fallthru
        _
    $region36: #{speech_conv.3} parent=5 // pred_fallthru
      _
    %p1026 = scmp.le.s32.totalorder 2, %s10
    // Predicated region
    $region41: #{speech_conv.3} parent=5 // pred_check
      %p1027 = pneg %p1026
    $region42: #{speech_conv.3} parent=5 // pred_check_branch
      %1029 = sbr.rel (%p1027) target = $region44
    $region43: #{speech_conv.3} parent=5 // pred_region
      %s1030 = ssub.s32 %s10, 2
      // Predicated region
      $region45: #{speech_conv.3} parent=43 // pred_check
        %p1031 = pneg %p128
      $region46: #{speech_conv.3} parent=43 // pred_check_branch
        %1033 = sbr.rel (%p1031) target = $region48
      $region47: #{speech_conv.3} parent=43 // pred_region
        %p1034 = scmp.lt.s32.totalorder %s16, 1
        %s1035 = scalar_select %p1034, %s16, 1
        %s1036 = smul.addr %s1035, 2
        %s1037 = smul.addr %s1036, 8
        %s1038 = scalar_lea.vmem %s4, %s1037
      $region48: #{speech_conv.3} parent=43 // pred_fallthru
        _
    $region44: #{speech_conv.3} parent=5 // pred_fallthru
      _
  $region6: #{speech_conv.3} parent=0 // loop_footer
    %s14 = sadd.s32 1, %s10
  $region7: #{speech_conv.3} parent=0 // loop_footer_branch
    %9 = sbr.rel target = $region3
  $region8: #{speech_conv.3} parent=0 // loop_exit
    _

</llo_original>
